<compile_context>
chip_gen: v7x
topology: tpu7x:2x2x1
jax: 0.10.0
libtpu: 0.0.40
codegen_flags: <defaults>
</compile_context>

<pallas_src>
import jax
import jax.numpy as jnp
from jax.experimental import pallas as pl
from jax.experimental.pallas import tpu as pltpu


def _round_up(a, m):
    return (a + m - 1) // m * m


def _lconv_kernel(x_ref, lt_ref, wi0_ref, wik_ref, out_ref, acc_ref):
    """One grid step: one (batch-tile, d-tile, k) triple.

    x_ref   : (B_t, Cin, D)    full feature axis (contraction index f)
    lt_ref  : (D, D_t)         L[k]^T tile, LT[f, d]
    wi0_ref : (Cout, Cin)      residual mixing matrix Wi[0]
    wik_ref : (Cout, Cin)      Wi[1+k]
    out_ref : (B_t, Cout, D_t)
    acc_ref : (B_t, Cout, D_t) f32 scratch accumulator (persists across k)
    """
    di = pl.program_id(1)
    k = pl.program_id(2)

    b_t, cin, d_full = x_ref.shape
    cout = wi0_ref.shape[0]
    d_t = lt_ref.shape[1]

    # ---- k == 0: initialize the accumulator with the residual term --------
    @pl.when(k == 0)
    def _init():
        off = pl.multiple_of(di * d_t, 128)
        x_tile = x_ref[:, :, pl.ds(off, d_t)].astype(jnp.float32)  # (B_t,Cin,D_t)
        w0 = jnp.broadcast_to(wi0_ref[...].astype(jnp.float32),
                              (b_t, cout, cin))
        acc_ref[...] = jnp.einsum('boc,bcd->bod', w0, x_tile,
                                  preferred_element_type=jnp.float32)

    # ---- heavy term: z[(b,c), d] = sum_f x[b,c,f] * L[k,d,f] --------------
    # Single fused 2-D MXU matmul with M = B_t*Cin (batch folded into M).
    x2d = x_ref[...].reshape(b_t * cin, d_full)
    z = jnp.dot(x2d, lt_ref[...], preferred_element_type=jnp.float32)
    z3 = z.reshape(b_t, cin, d_t)  # layout-preserving split (Cin % 8 == 0)

    # ---- channel mix: acc[b,o,d] += sum_c Wi[1+k,o,c] * z[b,c,d] ----------
    wk = jnp.broadcast_to(wik_ref[...].astype(jnp.float32), (b_t, cout, cin))
    acc_ref[...] += jnp.einsum('boc,bcd->bod', wk, z3,
                               preferred_element_type=jnp.float32)

    # ---- last k: write the output tile once --------------------------------
    @pl.when(k == pl.num_programs(2) - 1)
    def _finalize():
        out_ref[...] = acc_ref[...].astype(out_ref.dtype)


def lconv_forward(x, L, Wi, *, compute_dtype=None):
    """L-conv forward. x: (B, Cin, D), L: (num_L, D, D), Wi: (num_L+1, Cout, Cin)."""
    B, Cin, D = x.shape
    num_L = L.shape[0]
    Cout = Wi.shape[1]
    out_dtype = x.dtype

    # Edge case: no Lie generators -> the output is just the residual.
    if num_L == 0:
        return jnp.einsum('bcd,oc->bod', x, Wi[0]).astype(out_dtype)

    # Operand dtype for the MXU (pass jnp.bfloat16 for v6e/v7x peak rate);
    # accumulation is always f32 in VMEM scratch.
    cdtype = jnp.dtype(compute_dtype) if compute_dtype is not None else jnp.dtype(x.dtype)
    itemsize = cdtype.itemsize

    # ---- pad to TPU-friendly sizes (lane = 128, sublane = 8) --------------
    D_p = _round_up(D, 128)
    Cin_p = _round_up(Cin, 8)
    Cout_p = _round_up(Cout, 8)

    # d-tile: largest 128-multiple dividing D_p whose (D_p, D_t) L slab is small.
    budget = 3 << 20
    if D_p * D_p * itemsize <= budget:
        D_t = D_p
    else:
        D_t = 128
        for cand in (512, 256):
            if D_p % cand == 0 and D_p * cand * itemsize <= budget:
                D_t = cand
                break

    # batch tile: bound both the x block and the f32 accumulator/out block.
    bt_cap = min(budget // max(Cin_p * D_p * itemsize, 1),
                 budget // max(Cout_p * D_t * 4, 1))
    bt_cap = max(8, (bt_cap // 8) * 8)
    B_t = min(_round_up(B, 8), bt_cap)
    B_p = _round_up(B, B_t)

    # ---- wrapper-side layout work (padding + L transpose), done by XLA ----
    x_p = jnp.pad(x.astype(cdtype),
                  ((0, B_p - B), (0, Cin_p - Cin), (0, D_p - D)))
    Lt_p = jnp.pad(jnp.swapaxes(L.astype(cdtype), 1, 2),          # LT[k, f, d]
                   ((0, 0), (0, D_p - D), (0, D_p - D)))
    wi0_p = jnp.pad(Wi[0].astype(cdtype),
                    ((0, Cout_p - Cout), (0, Cin_p - Cin)))
    wik_p = jnp.pad(Wi[1:].astype(cdtype),
                    ((0, 0), (0, Cout_p - Cout), (0, Cin_p - Cin)))

    grid = (B_p // B_t, D_p // D_t, num_L)

    flops = int(2 * num_L * B_p * Cin_p * D_p * D_p          # L contraction
                + 2 * num_L * B_p * Cout_p * Cin_p * D_p     # channel mix
                + 2 * B_p * Cout_p * Cin_p * D_p)            # residual
    bytes_accessed = int(
        (x_p.size + Lt_p.size + wi0_p.size + wik_p.size) * itemsize
        + B_p * Cout_p * D_p * jnp.dtype(out_dtype).itemsize)

    out_p = pl.pallas_call(
        _lconv_kernel,
        out_shape=jax.ShapeDtypeStruct((B_p, Cout_p, D_p), out_dtype),
        grid_spec=pltpu.PrefetchScalarGridSpec(
            num_scalar_prefetch=0,
            grid=grid,
            in_specs=[
                # x: full Cin/D per batch tile (f is fully contracted each step)
                pl.BlockSpec((B_t, Cin_p, D_p), lambda bi, di, k: (bi, 0, 0)),
                # L[k]^T slab (D, D_t); leading num_L dim squeezed away
                pl.BlockSpec((None, D_p, D_t), lambda bi, di, k: (k, 0, di)),
                # Wi[0]
                pl.BlockSpec((Cout_p, Cin_p), lambda bi, di, k: (0, 0)),
                # Wi[1+k]; leading num_L dim squeezed away
                pl.BlockSpec((None, Cout_p, Cin_p), lambda bi, di, k: (k, 0, 0)),
            ],
            out_specs=pl.BlockSpec((B_t, Cout_p, D_t),
                                   lambda bi, di, k: (bi, 0, di)),
            scratch_shapes=[pltpu.VMEM((B_t, Cout_p, D_t), jnp.float32)],
        ),
        compiler_params=pltpu.CompilerParams(
            dimension_semantics=("parallel", "parallel", "arbitrary"),
            vmem_limit_bytes=48 * 1024 * 1024,
        ),
        cost_estimate=pl.CostEstimate(
            flops=flops, transcendentals=0, bytes_accessed=bytes_accessed),
    )(x_p, Lt_p, wi0_p, wik_p)

    return out_p[:B, :Cout, :D]


def _reference(x, L, Wi):
    residual = jnp.einsum('bcd,oc->bod', x, Wi[0])
    y = jnp.einsum('kdf,bcf,koc->bod', L, x, Wi[1:])
    return y + residual


if __name__ == "__main__":
    # Small, module-consistent shapes.
    B, Cin, Cout, D, num_L = 2, 4, 4, 16, 2

    key = jax.random.PRNGKey(0)
    kx, kL, kW = jax.random.split(key, 3)

    x = jax.random.normal(kx, (B, Cin, D), dtype=jnp.float32)

    # Deterministic parameter init mimicking kaiming_normal_ (fan_in mode).
    L_std = (2.0 / (D * D)) ** 0.5
    W_std = (2.0 / (Cout * Cin)) ** 0.5
    L = L_std * jax.random.normal(kL, (num_L, D, D), dtype=jnp.float32)
    Wi = W_std * jax.random.normal(kW, (num_L + 1, Cout, Cin), dtype=jnp.float32)

    out = jax.jit(lconv_forward)(x, L, Wi)
    out = jax.block_until_ready(out)

    ref = _reference(x, L, Wi)
    assert out.shape == (B, Cout, D)
    assert jnp.allclose(out, ref, atol=1e-5, rtol=1e-5), \
        float(jnp.max(jnp.abs(out - ref)))

    print("KERNEL_OK")
</pallas_src>

<mosaic_0001>
module attributes {stable_mosaic.version = 11 : i64} {
  func.func @_lconv_kernel(%arg0: i32, %arg1: i32, %arg2: i32, %arg3: memref<8x8x128xf32, #tpu.memory_space<vmem>>, %arg4: memref<1x128x128xf32, #tpu.memory_space<vmem>>, %arg5: memref<8x8xf32, #tpu.memory_space<vmem>>, %arg6: memref<1x8x8xf32, #tpu.memory_space<vmem>>, %arg7: memref<8x8x128xf32, #tpu.memory_space<vmem>>, %arg8: memref<8x8x128xf32, #tpu.memory_space<vmem>>) attributes {dimension_semantics = [#tpu.dimension_semantics<parallel>, #tpu.dimension_semantics<parallel>, #tpu.dimension_semantics<arbitrary>], iteration_bounds = array<i64: 1, 1, 2>, scalar_prefetch = 0 : i64, scratch_operands = 1 : i64, tpu.core_type = #tpu.core_type<tc>, window_params = [{transform_indices = @transform_0, window_bounds = array<i64: 8, 8, 128>}, {transform_indices = @transform_1, window_bounds = array<i64: 1, 128, 128>}, {pipeline_mode = #tpu.pipeline_mode<synchronous>, transform_indices = @transform_2, window_bounds = array<i64: 8, 8>}, {transform_indices = @transform_3, window_bounds = array<i64: 1, 8, 8>}, {transform_indices = @transform_4, window_bounds = array<i64: 8, 8, 128>}]} {
    %c0_i32 = arith.constant 0 : i32
    %0 = arith.cmpi eq, %arg2, %c0_i32 : i32
    %1 = arith.extui %0 : i1 to i32
    %c0_i32_0 = arith.constant 0 : i32
    %2 = arith.cmpi ne, %1, %c0_i32_0 : i32
    scf.if %2 {
      %c128_i32 = arith.constant 128 : i32
      %20 = arith.muli %arg1, %c128_i32 : i32
      %21 = tpu.assume_multiple %20, 128 : i32
      %c0_17 = arith.constant 0 : index
      %c0_18 = arith.constant 0 : index
      %22 = arith.index_cast %21 : i32 to index
      %23 = vector.load %arg3[%c0_17, %c0_18, %22] : memref<8x8x128xf32, #tpu.memory_space<vmem>>, vector<8x8x128xf32>
      %c0_19 = arith.constant 0 : index
      %c0_20 = arith.constant 0 : index
      %24 = vector.load %arg5[%c0_19, %c0_20] : memref<8x8xf32, #tpu.memory_space<vmem>>, vector<8x8xf32>
      %25 = vector.shape_cast %24 : vector<8x8xf32> to vector<1x8x8xf32>
      %26 = vector.broadcast %25 : vector<1x8x8xf32> to vector<8x8x8xf32>
      "tpu.trace_start"() <{level = 10 : i32, message = "boc,bcd->bod"}> : () -> ()
      %cst_21 = arith.constant dense<0.000000e+00> : vector<8x8x128xf32>
      %27 = tpu.matmul %26, %23, %cst_21 {dimension_numbers = #tpu.dot_dimension_numbers<[2], [1], [1], [2], [0, 0, 0, 1, 1, 2], [0], [0]>} : vector<8x8x8xf32>, vector<8x8x128xf32>, vector<8x8x128xf32> -> vector<8x8x128xf32>
      "tpu.trace_stop"() : () -> ()
      %c0_22 = arith.constant 0 : index
      %c0_23 = arith.constant 0 : index
      %c0_24 = arith.constant 0 : index
      %28 = vector.load %arg8[%c0_22, %c0_23, %c0_24] : memref<8x8x128xf32, #tpu.memory_space<vmem>>, vector<8x8x128xf32>
      tpu.vector_store %arg8[%c0_22, %c0_23, %c0_24], %27 {strides = array<i32>} : memref<8x8x128xf32, #tpu.memory_space<vmem>>, vector<8x8x128xf32>,
    } else {
    }
    %c0 = arith.constant 0 : index
    %c0_1 = arith.constant 0 : index
    %c0_2 = arith.constant 0 : index
    %3 = vector.load %arg3[%c0, %c0_1, %c0_2] : memref<8x8x128xf32, #tpu.memory_space<vmem>>, vector<8x8x128xf32>
    %4 = vector.shape_cast %3 : vector<8x8x128xf32> to vector<64x128xf32>
    %c0_3 = arith.constant 0 : index
    %c0_4 = arith.constant 0 : index
    %c0_5 = arith.constant 0 : index
    %5 = vector.load %arg4[%c0_3, %c0_4, %c0_5] : memref<1x128x128xf32, #tpu.memory_space<vmem>>, vector<1x128x128xf32>
    %6 = vector.shape_cast %5 : vector<1x128x128xf32> to vector<128x128xf32>
    %cst = arith.constant dense<0.000000e+00> : vector<64x128xf32>
    %7 = tpu.matmul %4, %6, %cst {dimension_numbers = #tpu.dot_dimension_numbers<[1], [0], [0], [1], [0, 0, 1, 1], [], []>} : vector<64x128xf32>, vector<128x128xf32>, vector<64x128xf32> -> vector<64x128xf32>
    %8 = vector.shape_cast %7 : vector<64x128xf32> to vector<8x8x128xf32>
    %c0_6 = arith.constant 0 : index
    %c0_7 = arith.constant 0 : index
    %c0_8 = arith.constant 0 : index
    %9 = vector.load %arg6[%c0_6, %c0_7, %c0_8] : memref<1x8x8xf32, #tpu.memory_space<vmem>>, vector<1x8x8xf32>
    %10 = vector.shape_cast %9 : vector<1x8x8xf32> to vector<8x8xf32>
    %11 = vector.shape_cast %10 : vector<8x8xf32> to vector<1x8x8xf32>
    %12 = vector.broadcast %11 : vector<1x8x8xf32> to vector<8x8x8xf32>
    %c0_9 = arith.constant 0 : index
    %c0_10 = arith.constant 0 : index
    %c0_11 = arith.constant 0 : index
    %13 = vector.load %arg8[%c0_9, %c0_10, %c0_11] : memref<8x8x128xf32, #tpu.memory_space<vmem>>, vector<8x8x128xf32>
    "tpu.trace_start"() <{level = 10 : i32, message = "boc,bcd->bod"}> : () -> ()
    %cst_12 = arith.constant dense<0.000000e+00> : vector<8x8x128xf32>
    %14 = tpu.matmul %12, %8, %cst_12 {dimension_numbers = #tpu.dot_dimension_numbers<[2], [1], [1], [2], [0, 0, 0, 1, 1, 2], [0], [0]>} : vector<8x8x8xf32>, vector<8x8x128xf32>, vector<8x8x128xf32> -> vector<8x8x128xf32>
    "tpu.trace_stop"() : () -> ()
    %15 = arith.addf %13, %14 : vector<8x8x128xf32>
    %c0_13 = arith.constant 0 : index
    %c0_14 = arith.constant 0 : index
    %c0_15 = arith.constant 0 : index
    %16 = vector.load %arg8[%c0_13, %c0_14, %c0_15] : memref<8x8x128xf32, #tpu.memory_space<vmem>>, vector<8x8x128xf32>
    tpu.vector_store %arg8[%c0_13, %c0_14, %c0_15], %15 {strides = array<i32>} : memref<8x8x128xf32, #tpu.memory_space<vmem>>, vector<8x8x128xf32>,
    %c1_i32 = arith.constant 1 : i32
    %17 = arith.cmpi eq, %arg2, %c1_i32 : i32
    %18 = arith.extui %17 : i1 to i32
    %c0_i32_16 = arith.constant 0 : i32
    %19 = arith.cmpi ne, %18, %c0_i32_16 : i32
    scf.if %19 {
      %c0_17 = arith.constant 0 : index
      %c0_18 = arith.constant 0 : index
      %c0_19 = arith.constant 0 : index
      %20 = vector.load %arg8[%c0_17, %c0_18, %c0_19] : memref<8x8x128xf32, #tpu.memory_space<vmem>>, vector<8x8x128xf32>
      %c0_20 = arith.constant 0 : index
      %c0_21 = arith.constant 0 : index
      %c0_22 = arith.constant 0 : index
      %21 = vector.load %arg7[%c0_20, %c0_21, %c0_22] : memref<8x8x128xf32, #tpu.memory_space<vmem>>, vector<8x8x128xf32>
      tpu.vector_store %arg7[%c0_20, %c0_21, %c0_22], %20 {strides = array<i32>} : memref<8x8x128xf32, #tpu.memory_space<vmem>>, vector<8x8x128xf32>,
    } else {
    }
    return
  }
  func.func @transform_0(%arg0: i32, %arg1: i32, %arg2: i32) -> (i32, i32, i32) {
    %c0_i32 = arith.constant 0 : i32
    %c0_i32_0 = arith.constant 0 : i32
    %c0_i32_1 = arith.constant 0 : i32
    return %arg0, %c0_i32, %c0_i32_0 : i32, i32, i32
  }
  func.func @transform_1(%arg0: i32, %arg1: i32, %arg2: i32) -> (i32, i32, i32) {
    %c0_i32 = arith.constant 0 : i32
    %c0_i32_0 = arith.constant 0 : i32
    return %arg2, %c0_i32, %arg1 : i32, i32, i32
  }
  func.func @transform_2(%arg0: i32, %arg1: i32, %arg2: i32) -> (i32, i32) {
    %c0_i32 = arith.constant 0 : i32
    %c0_i32_0 = arith.constant 0 : i32
    %c0_i32_1 = arith.constant 0 : i32
    return %c0_i32, %c0_i32_0 : i32, i32
  }
  func.func @transform_3(%arg0: i32, %arg1: i32, %arg2: i32) -> (i32, i32, i32) {
    %c0_i32 = arith.constant 0 : i32
    %c0_i32_0 = arith.constant 0 : i32
    %c0_i32_1 = arith.constant 0 : i32
    return %arg2, %c0_i32, %c0_i32_0 : i32, i32, i32
  }
  func.func @transform_4(%arg0: i32, %arg1: i32, %arg2: i32) -> (i32, i32, i32) {
    %c0_i32 = arith.constant 0 : i32
    %c0_i32_0 = arith.constant 0 : i32
    return %arg0, %c0_i32, %arg1 : i32, i32, i32
  }
}

</mosaic_0001>

<llo_original>
// kernel: lconv_forward.1
$region0: #{lconv_forward.1}
  #allocation0 [shape = 'u32[]', space=smem, size = 0x4, offset = 0x4, fixed_abs, tag = 'smem constant byte address 0x4 - core index']
  #allocation1 [shape = 'u32[144,128]{1,0:T(1,128)}', space=vmem, size = 0x12000, scoped, tag = 'internal scratch']
  #allocation2 [shape = 'f32[8,8,128]{2,1,0:T(8,128)}', space=vmem, size = 0x8000, scoped, tag = 'scratch operand']
  %s0 = inlined_call_operand.vmem [shape: f32[8,8,128], index: 0, kind: input, shape index: {}]
  %s1 = inlined_call_operand.vmem [shape: f32[2,128,128], index: 1, kind: input, shape index: {}]
  %s2 = inlined_call_operand.vmem [shape: f32[8,8], index: 2, kind: input, shape index: {}]
  %s3 = inlined_call_operand.vmem [shape: f32[2,8,8], index: 3, kind: input, shape index: {}]
  %s4 = inlined_call_operand.vmem [shape: f32[8,8,128], index: 4, kind: output, shape index: {}]
  %s5 = sld [smem:[#allocation0]]
  $region57: #{lconv_forward.1} parent=0
    _
  %s7 = ssub.s32 1, %s5
  %s8 = scalar_select 0, %s7, %s5
  loop: start=0, step=1, limit=4
  $region2: #{lconv_forward.1} parent=0 // loop_pre_header
    _
  $region3: #{lconv_forward.1} parent=0 // loop_header
    %s10 = sphi 0, %s14
    %p11 = scmp.ge.s32.totalorder %s10, 4
    %s17 = sphi 0, %s36
    %s18 = sphi 0, %s32
    %s19 = sphi 0, %s28
    %s20 = sphi 0, %s17
    %s21 = sphi 0, %s18
    %s22 = sphi 0, %s19
    %s23 = sphi 0, %s20
    %s24 = sphi 0, %s21
    %s25 = sphi 0, %s22
    %s39 = sphi 0, %s41
    %s42 = sphi 0, %s39
    %s43 = sphi 0, %s42
    %s59 = sphi 0, %s43
    %s67 = sphi 0, %s69
    %s70 = sphi 0, %s67
    %s71 = sphi 0, %s70
    %s87 = sphi 0, %s71
    %s91 = sphi 0, %s91
    %s93 = sphi 0, %s91
    %s94 = sphi 0, %s93
    %s108 = sphi 0, %s94
    %s114 = sphi 0, %s116
    %s117 = sphi 0, %s114
    %s118 = sphi 0, %s117
    %s134 = sphi 0, %s118
    %s142 = sphi 0, %s144
    %s145 = sphi 0, %s142
    %s146 = sphi 0, %s145
    %s162 = sphi 0, %s146
  $region4: #{lconv_forward.1} parent=0 // loop_header_branch
    %13 = sbr.rel (%p11) target = $region8
  $region5: #{lconv_forward.1} parent=0 // loop_body
    %s15 = ssub.s32 %s10, 1
    %s16 = ssub.s32 %s10, 2
    %s26 = sadd.s32 1, %s19
    %p27 = scmp.ge.s32.totalorder %s26, 2
    %s28 = scalar_select %p27, 0, %s26
    %s29 = sadd.s32 1, %s18
    %s30 = scalar_select %p27, %s29, %s18
    %p31 = scmp.ge.s32.totalorder %s30, 1
    %s32 = scalar_select %p31, 0, %s30
    %s33 = sadd.s32 1, %s17
    %s34 = scalar_select %p31, %s33, %s17
    %p35 = scmp.ge.s32.totalorder %s34, 1
    %s36 = scalar_select %p35, 0, %s34
    %s37 = ssub.s32 %s17, %s36
    %p38 = scmp.eq.s32.totalorder %s37, 0
    %s40 = sadd.s32 %s39, 1
    %s41 = scalar_select %p38, %s39, %s40
    %p44 = pneg %p38
    %p45 = scmp.eq.s32.totalorder %s10, 1
    %p46 = por %p44, %p45
    %p47 = scmp.ne.s32.totalorder %s39, %s42
    %p48 = scmp.eq.s32.totalorder %s10, 0
    %p49 = por %p47, %p48
    %p50 = scmp.ne.s32.totalorder %s39, %s42
    %p51 = scmp.eq.s32.totalorder %s15, 1
    %p52 = por %p50, %p51
    %p53 = scmp.ne.s32.totalorder %s42, %s43
    %p54 = scmp.eq.s32.totalorder %s15, 0
    %p55 = por %p53, %p54
    %p56 = scmp.ne.s32.totalorder %s42, %s43
    %p57 = scmp.eq.s32.totalorder %s16, 1
    %p58 = por %p56, %p57
    %p60 = scmp.ne.s32.totalorder %s43, %s59
    %p61 = scmp.eq.s32.totalorder %s16, 0
    %p62 = por %p60, %p61
    %s63 = ssub.s32 %s19, %s28
    %s64 = ssub.s32 %s18, %s32
    %s65 = sor.u32 %s63, %s64
    %p66 = scmp.eq.s32.totalorder %s65, 0
    %s68 = sadd.s32 %s67, 1
    %s69 = scalar_select %p66, %s67, %s68
    %p72 = pneg %p66
    %p73 = scmp.eq.s32.totalorder %s10, 1
    %p74 = por %p72, %p73
    %p75 = scmp.ne.s32.totalorder %s67, %s70
    %p76 = scmp.eq.s32.totalorder %s10, 0
    %p77 = por %p75, %p76
    %p78 = scmp.ne.s32.totalorder %s67, %s70
    %p79 = scmp.eq.s32.totalorder %s15, 1
    %p80 = por %p78, %p79
    %p81 = scmp.ne.s32.totalorder %s70, %s71
    %p82 = scmp.eq.s32.totalorder %s15, 0
    %p83 = por %p81, %p82
    %p84 = scmp.ne.s32.totalorder %s70, %s71
    %p85 = scmp.eq.s32.totalorder %s16, 1
    %p86 = por %p84, %p85
    %p88 = scmp.ne.s32.totalorder %s71, %s87
    %p89 = scmp.eq.s32.totalorder %s16, 0
    %p90 = por %p88, %p89
    %s92 = sadd.s32 %s91, 1
    %p95 = scmp.eq.s32.totalorder %s10, 1
    %p96 = scmp.ne.s32.totalorder %s91, %s93
    %p97 = scmp.eq.s32.totalorder %s10, 0
    %p98 = por %p96, %p97
    %p99 = scmp.ne.s32.totalorder %s91, %s93
    %p100 = scmp.eq.s32.totalorder %s15, 1
    %p101 = por %p99, %p100
    %p102 = scmp.ne.s32.totalorder %s93, %s94
    %p103 = scmp.eq.s32.totalorder %s15, 0
    %p104 = por %p102, %p103
    %p105 = scmp.ne.s32.totalorder %s93, %s94
    %p106 = scmp.eq.s32.totalorder %s16, 1
    %p107 = por %p105, %p106
    %p109 = scmp.ne.s32.totalorder %s94, %s108
    %p110 = scmp.eq.s32.totalorder %s16, 0
    %p111 = por %p109, %p110
    %s112 = ssub.s32 %s19, %s28
    %p113 = scmp.eq.s32.totalorder %s112, 0
    %s115 = sadd.s32 %s114, 1
    %s116 = scalar_select %p113, %s114, %s115
    %p119 = pneg %p113
    %p120 = scmp.eq.s32.totalorder %s10, 1
    %p121 = por %p119, %p120
    %p122 = scmp.ne.s32.totalorder %s114, %s117
    %p123 = scmp.eq.s32.totalorder %s10, 0
    %p124 = por %p122, %p123
    %p125 = scmp.ne.s32.totalorder %s114, %s117
    %p126 = scmp.eq.s32.totalorder %s15, 1
    %p127 = por %p125, %p126
    %p128 = scmp.ne.s32.totalorder %s117, %s118
    %p129 = scmp.eq.s32.totalorder %s15, 0
    %p130 = por %p128, %p129
    %p131 = scmp.ne.s32.totalorder %s117, %s118
    %p132 = scmp.eq.s32.totalorder %s16, 1
    %p133 = por %p131, %p132
    %p135 = scmp.ne.s32.totalorder %s118, %s134
    %p136 = scmp.eq.s32.totalorder %s16, 0
    %p137 = por %p135, %p136
    %s138 = ssub.s32 %s17, %s36
    %s139 = ssub.s32 %s18, %s32
    %s140 = sor.u32 %s138, %s139
    %p141 = scmp.eq.s32.totalorder %s140, 0
    %s143 = sadd.s32 %s142, 1
    %s144 = scalar_select %p141, %s142, %s143
    %p147 = pneg %p141
    %p148 = scmp.eq.s32.totalorder %s10, 1
    %p149 = por %p147, %p148
    %p150 = scmp.ne.s32.totalorder %s142, %s145
    %p151 = scmp.eq.s32.totalorder %s10, 0
    %p152 = por %p150, %p151
    %p153 = scmp.ne.s32.totalorder %s142, %s145
    %p154 = scmp.eq.s32.totalorder %s15, 1
    %p155 = por %p153, %p154
    %p156 = scmp.ne.s32.totalorder %s145, %s146
    %p157 = scmp.eq.s32.totalorder %s15, 0
    %p158 = por %p156, %p157
    %p159 = scmp.ne.s32.totalorder %s145, %s146
    %p160 = scmp.eq.s32.totalorder %s16, 1
    %p161 = por %p159, %p160
    %p163 = scmp.ne.s32.totalorder %s146, %s162
    %p164 = scmp.eq.s32.totalorder %s16, 0
    %p165 = por %p163, %p164
    %p166 = scmp.le.s32.totalorder 1, %s10
    %p167 = scmp.lt.s32.totalorder %s10, 3
    %p168 = pnand %p166, %p167
    %p169 = pneg %p168
    // Predicated region
    $region9: #{lconv_forward.1} parent=5 // pred_check
      _
    $region10: #{lconv_forward.1} parent=5 // pred_check_branch
      %171 = sbr.rel (%p168) target = $region12
    $region11: #{lconv_forward.1} parent=5 // pred_region
      %s172 = ssub.s32 %s10, 1
      // Predicated region
      $region13: #{lconv_forward.1} parent=11 // pred_check
        %p173 = pneg %p55
      $region14: #{lconv_forward.1} parent=11 // pred_check_branch
        %175 = sbr.rel (%p173) target = $region16
      $region15: #{lconv_forward.1} parent=11 // pred_region
        %s176 = smul.u32 8, %s20
        %p177 = scmp.lt.s32.totalorder %s176, 7
        %s178 = scalar_select %p177, %s176, 7
        %s179 = smul.addr %s178, 8
        %s180 = scalar_lea.vmem %s0, %s179
        %s181 = smul.u32 8, %s20
      $region16: #{lconv_forward.1} parent=11 // pred_fallthru
        _
      // Predicated region
      $region17: #{lconv_forward.1} parent=11 // pred_check
        %p182 = pneg %p104
      $region18: #{lconv_forward.1} parent=11 // pred_check_branch
        %184 = sbr.rel (%p182) target = $region20
      $region19: #{lconv_forward.1} parent=11 // pred_region
        _
      $region20: #{lconv_forward.1} parent=11 // pred_fallthru
        _
    $region12: #{lconv_forward.1} parent=5 // pred_fallthru
      _
    %p185 = scmp.lt.s32.totalorder %s10, 2
    // Predicated region
    $region21: #{lconv_forward.1} parent=5 // pred_check
      %p186 = pneg %p185
    $region22: #{lconv_forward.1} parent=5 // pred_check_branch
      %188 = sbr.rel (%p186) target = $region24
    $region23: #{lconv_forward.1} parent=5 // pred_region
      // Predicated region
      $region25: #{lconv_forward.1} parent=23 // pred_check
        %p189 = pneg %p77
      $region26: #{lconv_forward.1} parent=23 // pred_check_branch
        %191 = sbr.rel (%p189) target = $region28
      $region27: #{lconv_forward.1} parent=23 // pred_region
        %p192 = scmp.lt.s32.totalorder %s19, 1
        %s193 = scalar_select %p192, %s19, 1
        %p194 = scmp.lt.s32.totalorder %s18, 0
        %s195 = scalar_select %p194, %s18, 0
        %s196 = smul.addr %s193, 16
        %s197 = sadd.s32 %s195, %s196
        %s198 = smul.addr %s197, 8
        %s199 = scalar_lea.vmem %s1, %s198
      $region28: #{lconv_forward.1} parent=23 // pred_fallthru
        _
      // Predicated region
      $region29: #{lconv_forward.1} parent=23 // pred_check
        %p200 = pneg %p124
      $region30: #{lconv_forward.1} parent=23 // pred_check_branch
        %202 = sbr.rel (%p200) target = $region32
      $region31: #{lconv_forward.1} parent=23 // pred_region
        %p203 = scmp.lt.s32.totalorder %s19, 1
        %s204 = scalar_select %p203, %s19, 1
        %s205 = smul.addr %s204, 8
        %s206 = scalar_lea.vmem %s3, %s205
      $region32: #{lconv_forward.1} parent=23 // pred_fallthru
        _
    $region24: #{lconv_forward.1} parent=5 // pred_fallthru
      _
    %p207 = scmp.le.s32.totalorder 1, %s10
    %p208 = scmp.lt.s32.totalorder %s10, 3
    %p209 = pnand %p207, %p208
    %p210 = pneg %p209
    // Predicated region
    $region33: #{lconv_forward.1} parent=5 // pred_check
      _
    $region34: #{lconv_forward.1} parent=5 // pred_check_branch
      %212 = sbr.rel (%p209) target = $region36
    $region35: #{lconv_forward.1} parent=5 // pred_region
      %s213 = ssub.s32 %s10, 1
      %s214 = smul.u32 8, %s20
      %p215 = scmp.lt.s32.totalorder %s214, 7
      %s216 = scalar_select %p215, %s214, 7
      %s217 = smul.addr %s216, 8
      %s218 = scalar_lea.vmem %s0, %s217
      %p219 = pneg %p55
      %p220 = pneg %p52
      %p221 = scmp.lt.s32.totalorder %s22, 1
      %s222 = scalar_select %p221, %s22, 1
      %p223 = scmp.lt.s32.totalorder %s21, 0
      %s224 = scalar_select %p223, %s21, 0
      %s225 = smul.addr %s222, 16
      %s226 = sadd.s32 %s224, %s225
      %s227 = smul.addr %s226, 8
      %s228 = scalar_lea.vmem %s1, %s227
      %p229 = pneg %p83
      %p230 = pneg %p80
      %p231 = pneg %p104
      %p232 = pneg %p101
      %p233 = scmp.lt.s32.totalorder %s22, 1
      %s234 = scalar_select %p233, %s22, 1
      %s235 = smul.addr %s234, 8
      %s236 = scalar_lea.vmem %s3, %s235
      %p237 = pneg %p130
      %p238 = pneg %p127
      %p239 = pneg %p158
      %p240 = pneg %p155
      %s241 = smul.u32 8, %s20
      %p242 = scmp.lt.s32.totalorder %s241, 7
      %s243 = scalar_select %p242, %s241, 7
      %p244 = scmp.lt.s32.totalorder %s21, 0
      %s245 = scalar_select %p244, %s21, 0
      %s246 = sadd.s32 %s245, %s243
      %s247 = smul.addr %s246, 8
      %s248 = scalar_lea.vmem %s4, %s247
      %s249 = smul.u32 8, %s20
      %p250 = scmp.lt.s32.totalorder %s249, 7
      %s251 = scalar_select %p250, %s249, 7
      %s252 = smul.addr %s251, 8
      %s253 = scalar_lea.vmem %s0, %s252
      %s254 = smul.u32 8, %s20
      %p255 = scmp.lt.s32.totalorder %s22, 1
      %s256 = scalar_select %p255, %s22, 1
      %p257 = scmp.lt.s32.totalorder %s21, 0
      %s258 = scalar_select %p257, %s21, 0
      %s259 = smul.addr %s256, 16
      %s260 = sadd.s32 %s258, %s259
      %s261 = smul.addr %s260, 8
      %s262 = scalar_lea.vmem %s1, %s261
      %p263 = scmp.lt.s32.totalorder %s22, 1
      %s264 = scalar_select %p263, %s22, 1
      %s265 = smul.addr %s264, 8
      %s266 = scalar_lea.vmem %s3, %s265
      %s267 = smul.u32 8, %s20
      %p268 = scmp.lt.s32.totalorder %s267, 7
      %s269 = scalar_select %p268, %s267, 7
      %p270 = scmp.lt.s32.totalorder %s21, 0
      %s271 = scalar_select %p270, %s21, 0
      %s272 = sadd.s32 %s271, %s269
      %s273 = smul.addr %s272, 8
      %s274 = scalar_lea.vmem %s4, %s273
      %s275 = smul.u32 8, %s20
      %p276 = scmp.eq.s32.totalorder %s22, 0
      // Predicated region
      $region37: #{lconv_forward.1} parent=35 // pred_check
        %p277 = pneg %p276
      $region38: #{lconv_forward.1} parent=35 // pred_check_branch
        %279 = sbr.rel (%p277) target = $region40
      $region39: #{lconv_forward.1} parent=35 // pred_region
        %s280 = smul.u32 %s21, 128
        %s281 = sshra.s32 %s280, 7
        %s282 = sand.u32 %s280, 127
        %s283 = scalar_lea.vmem %s253, %s281
        %v284 = vld [vmem:[%s283] sm:$0xff]
        %v285 = vld [vmem:[%s283 + $0x8] sm:$0xff]
        %v286 = vld [vmem:[%s283 + $0x10] sm:$0xff]
        %v287 = vld [vmem:[%s283 + $0x18] sm:$0xff]
        %v288 = vld [vmem:[%s283 + $0x20] sm:$0xff]
        %v289 = vld [vmem:[%s283 + $0x28] sm:$0xff]
        %v290 = vld [vmem:[%s283 + $0x30] sm:$0xff]
        %v291 = vld [vmem:[%s283 + $0x38] sm:$0xff]
        %v292 = vld [vmem:[%s2] sm:$0xff]
        %vm293 = vcmask 64512
        %v295 = vsel %vm293, %v292, 0
        %297 = vmatprep.subr.mxu0 0.0
        %298 = vmatpush1.msra.mxu0 %v284
        %299 = vmatprep.subr.mxu0 0.0
        %300 = vmatpush1.msra.mxu0 0.0
        %301 = vmatprep.subr.mxu0 0.0
        %302 = vmatpush1.msra.mxu0 0.0
        %303 = vmatprep.subr.mxu0 0.0
        %304 = vmatpush1.msra.mxu0 0.0
        %305 = vmatprep.subr.mxu0 0.0
        %306 = vmatpush1.msra.mxu0 0.0
        %307 = vmatprep.subr.mxu0 0.0
        %308 = vmatpush1.msra.mxu0 0.0
        %309 = vmatprep.subr.mxu0 0.0
        %310 = vmatpush1.msra.mxu0 0.0
        %311 = vmatprep.subr.mxu0 0.0
        %312 = vmatpush1.msra.mxu0 0.0
        %313 = vmatprep.subr.mxu0 0.0
        %314 = vmatpush1.msra.mxu0 0.0
        %315 = vmatprep.subr.mxu0 0.0
        %316 = vmatpush1.msra.mxu0 0.0
        %317 = vmatprep.subr.mxu0 0.0
        %318 = vmatpush1.msra.mxu0 0.0
        %319 = vmatprep.subr.mxu0 0.0
        %320 = vmatpush1.msra.mxu0 0.0
        %321 = vmatprep.subr.mxu0 0.0
        %322 = vmatpush1.msra.mxu0 0.0
        %323 = vmatprep.subr.mxu0 0.0
        %324 = vmatpush1.msra.mxu0 0.0
        %325 = vmatprep.subr.mxu0 0.0
        %326 = vmatpush1.msra.mxu0 0.0
        %327 = vmatprep.subr.mxu0 0.0
        %328 = vmatpush1.msra.mxu0 0.0
        %329 = vmatprep.subr.mxu0 0.0
        %330 = vmatpush1.msra.mxu0 0.0
        %331 = vmatprep.subr.mxu0 0.0
        %332 = vmatpush1.msra.mxu0 0.0
        %333 = vmatprep.subr.mxu0 0.0
        %334 = vmatpush1.msra.mxu0 0.0
        %335 = vmatprep.subr.mxu0 0.0
        %336 = vmatpush1.msra.mxu0 0.0
        %337 = vmatprep.subr.mxu0 0.0
        %338 = vmatpush1.msra.mxu0 0.0
        %339 = vmatprep.subr.mxu0 0.0
        %340 = vmatpush1.msra.mxu0 0.0
        %341 = vmatprep.subr.mxu0 0.0
        %342 = vmatpush1.msra.mxu0 0.0
        %343 = vmatprep.subr.mxu0 0.0
        %344 = vmatpush1.msra.mxu0 0.0
        %345 = vmatprep.subr.mxu0 0.0
        %346 = vmatpush1.msra.mxu0 0.0
        %347 = vmatprep.subr.mxu0 0.0
        %348 = vmatpush1.msra.mxu0 0.0
        %349 = vmatprep.subr.mxu0 0.0
        %350 = vmatpush1.msra.mxu0 0.0
        %351 = vmatprep.subr.mxu0 0.0
        %352 = vmatpush1.msra.mxu0 0.0
        %353 = vmatprep.subr.mxu0 0.0
        %354 = vmatpush1.msra.mxu0 0.0
        %355 = vmatprep.subr.mxu0 0.0
        %356 = vmatpush1.msra.mxu0 0.0
        %357 = vmatprep.subr.mxu0 0.0
        %358 = vmatpush1.msra.mxu0 0.0
        %359 = vmatprep.subr.mxu0 0.0
        %360 = vmatpush1.msra.mxu0 0.0
        %361 = vmatprep.mubr.f32.mxu0 0.0
        %362 = vmatmul.mubr.f32.gmra.mrb[0].mxu0 %v295
        %v363 = vpop.f32.mrb[0].mxu0
        %v364 = vadd.f32 0.0, %v363
        %v365 = vpop.f32.mrb[0].mxu0
        %366 = vdwg.mxu0
        %367 = vmatprep.subr.mxu0 0.0
        %368 = vmatpush1.msra.mxu0 %v285
        %369 = vmatprep.subr.mxu0 0.0
        %370 = vmatpush1.msra.mxu0 0.0
        %371 = vmatprep.subr.mxu0 0.0
        %372 = vmatpush1.msra.mxu0 0.0
        %373 = vmatprep.subr.mxu0 0.0
        %374 = vmatpush1.msra.mxu0 0.0
        %375 = vmatprep.subr.mxu0 0.0
        %376 = vmatpush1.msra.mxu0 0.0
        %377 = vmatprep.subr.mxu0 0.0
        %378 = vmatpush1.msra.mxu0 0.0
        %379 = vmatprep.subr.mxu0 0.0
        %380 = vmatpush1.msra.mxu0 0.0
        %381 = vmatprep.subr.mxu0 0.0
        %382 = vmatpush1.msra.mxu0 0.0
        %383 = vmatprep.subr.mxu0 0.0
        %384 = vmatpush1.msra.mxu0 0.0
        %385 = vmatprep.subr.mxu0 0.0
        %386 = vmatpush1.msra.mxu0 0.0
        %387 = vmatprep.subr.mxu0 0.0
        %388 = vmatpush1.msra.mxu0 0.0
        %389 = vmatprep.subr.mxu0 0.0
        %390 = vmatpush1.msra.mxu0 0.0
        %391 = vmatprep.subr.mxu0 0.0
        %392 = vmatpush1.msra.mxu0 0.0
        %393 = vmatprep.subr.mxu0 0.0
        %394 = vmatpush1.msra.mxu0 0.0
        %395 = vmatprep.subr.mxu0 0.0
        %396 = vmatpush1.msra.mxu0 0.0
        %397 = vmatprep.subr.mxu0 0.0
        %398 = vmatpush1.msra.mxu0 0.0
        %399 = vmatprep.subr.mxu0 0.0
        %400 = vmatpush1.msra.mxu0 0.0
        %401 = vmatprep.subr.mxu0 0.0
        %402 = vmatpush1.msra.mxu0 0.0
        %403 = vmatprep.subr.mxu0 0.0
        %404 = vmatpush1.msra.mxu0 0.0
        %405 = vmatprep.subr.mxu0 0.0
        %406 = vmatpush1.msra.mxu0 0.0
        %407 = vmatprep.subr.mxu0 0.0
        %408 = vmatpush1.msra.mxu0 0.0
        %409 = vmatprep.subr.mxu0 0.0
        %410 = vmatpush1.msra.mxu0 0.0
        %411 = vmatprep.subr.mxu0 0.0
        %412 = vmatpush1.msra.mxu0 0.0
        %413 = vmatprep.subr.mxu0 0.0
        %414 = vmatpush1.msra.mxu0 0.0
        %415 = vmatprep.subr.mxu0 0.0
        %416 = vmatpush1.msra.mxu0 0.0
        %417 = vmatprep.subr.mxu0 0.0
        %418 = vmatpush1.msra.mxu0 0.0
        %419 = vmatprep.subr.mxu0 0.0
        %420 = vmatpush1.msra.mxu0 0.0
        %421 = vmatprep.subr.mxu0 0.0
        %422 = vmatpush1.msra.mxu0 0.0
        %423 = vmatprep.subr.mxu0 0.0
        %424 = vmatpush1.msra.mxu0 0.0
        %425 = vmatprep.subr.mxu0 0.0
        %426 = vmatpush1.msra.mxu0 0.0
        %427 = vmatprep.subr.mxu0 0.0
        %428 = vmatpush1.msra.mxu0 0.0
        %429 = vmatprep.subr.mxu0 0.0
        %430 = vmatpush1.msra.mxu0 0.0
        %431 = vmatprep.mubr.f32.mxu0 0.0
        %432 = vmatmul.mubr.f32.gmra.mrb[0].mxu0 %v295
        %v433 = vpop.f32.mrb[0].mxu0
        %v434 = vadd.f32 0.0, %v433
        %v435 = vpop.f32.mrb[0].mxu0
        %436 = vdwg.mxu0
        %437 = vmatprep.subr.mxu0 0.0
        %438 = vmatpush1.msra.mxu0 %v286
        %439 = vmatprep.subr.mxu0 0.0
        %440 = vmatpush1.msra.mxu0 0.0
        %441 = vmatprep.subr.mxu0 0.0
        %442 = vmatpush1.msra.mxu0 0.0
        %443 = vmatprep.subr.mxu0 0.0
        %444 = vmatpush1.msra.mxu0 0.0
        %445 = vmatprep.subr.mxu0 0.0
        %446 = vmatpush1.msra.mxu0 0.0
        %447 = vmatprep.subr.mxu0 0.0
        %448 = vmatpush1.msra.mxu0 0.0
        %449 = vmatprep.subr.mxu0 0.0
        %450 = vmatpush1.msra.mxu0 0.0
        %451 = vmatprep.subr.mxu0 0.0
        %452 = vmatpush1.msra.mxu0 0.0
        %453 = vmatprep.subr.mxu0 0.0
        %454 = vmatpush1.msra.mxu0 0.0
        %455 = vmatprep.subr.mxu0 0.0
        %456 = vmatpush1.msra.mxu0 0.0
        %457 = vmatprep.subr.mxu0 0.0
        %458 = vmatpush1.msra.mxu0 0.0
        %459 = vmatprep.subr.mxu0 0.0
        %460 = vmatpush1.msra.mxu0 0.0
        %461 = vmatprep.subr.mxu0 0.0
        %462 = vmatpush1.msra.mxu0 0.0
        %463 = vmatprep.subr.mxu0 0.0
        %464 = vmatpush1.msra.mxu0 0.0
        %465 = vmatprep.subr.mxu0 0.0
        %466 = vmatpush1.msra.mxu0 0.0
        %467 = vmatprep.subr.mxu0 0.0
        %468 = vmatpush1.msra.mxu0 0.0
        %469 = vmatprep.subr.mxu0 0.0
        %470 = vmatpush1.msra.mxu0 0.0
        %471 = vmatprep.subr.mxu0 0.0
        %472 = vmatpush1.msra.mxu0 0.0
        %473 = vmatprep.subr.mxu0 0.0
        %474 = vmatpush1.msra.mxu0 0.0
        %475 = vmatprep.subr.mxu0 0.0
        %476 = vmatpush1.msra.mxu0 0.0
        %477 = vmatprep.subr.mxu0 0.0
        %478 = vmatpush1.msra.mxu0 0.0
        %479 = vmatprep.subr.mxu0 0.0
        %480 = vmatpush1.msra.mxu0 0.0
        %481 = vmatprep.subr.mxu0 0.0
        %482 = vmatpush1.msra.mxu0 0.0
        %483 = vmatprep.subr.mxu0 0.0
        %484 = vmatpush1.msra.mxu0 0.0
        %485 = vmatprep.subr.mxu0 0.0
        %486 = vmatpush1.msra.mxu0 0.0
        %487 = vmatprep.subr.mxu0 0.0
        %488 = vmatpush1.msra.mxu0 0.0
        %489 = vmatprep.subr.mxu0 0.0
        %490 = vmatpush1.msra.mxu0 0.0
        %491 = vmatprep.subr.mxu0 0.0
        %492 = vmatpush1.msra.mxu0 0.0
        %493 = vmatprep.subr.mxu0 0.0
        %494 = vmatpush1.msra.mxu0 0.0
        %495 = vmatprep.subr.mxu0 0.0
        %496 = vmatpush1.msra.mxu0 0.0
        %497 = vmatprep.subr.mxu0 0.0
        %498 = vmatpush1.msra.mxu0 0.0
        %499 = vmatprep.subr.mxu0 0.0
        %500 = vmatpush1.msra.mxu0 0.0
        %501 = vmatprep.mubr.f32.mxu0 0.0
        %502 = vmatmul.mubr.f32.gmra.mrb[0].mxu0 %v295
        %v503 = vpop.f32.mrb[0].mxu0
        %v504 = vadd.f32 0.0, %v503
        %v505 = vpop.f32.mrb[0].mxu0
        %506 = vdwg.mxu0
        %507 = vmatprep.subr.mxu0 0.0
        %508 = vmatpush1.msra.mxu0 %v287
        %509 = vmatprep.subr.mxu0 0.0
        %510 = vmatpush1.msra.mxu0 0.0
        %511 = vmatprep.subr.mxu0 0.0
        %512 = vmatpush1.msra.mxu0 0.0
        %513 = vmatprep.subr.mxu0 0.0
        %514 = vmatpush1.msra.mxu0 0.0
        %515 = vmatprep.subr.mxu0 0.0
        %516 = vmatpush1.msra.mxu0 0.0
        %517 = vmatprep.subr.mxu0 0.0
        %518 = vmatpush1.msra.mxu0 0.0
        %519 = vmatprep.subr.mxu0 0.0
        %520 = vmatpush1.msra.mxu0 0.0
        %521 = vmatprep.subr.mxu0 0.0
        %522 = vmatpush1.msra.mxu0 0.0
        %523 = vmatprep.subr.mxu0 0.0
        %524 = vmatpush1.msra.mxu0 0.0
        %525 = vmatprep.subr.mxu0 0.0
        %526 = vmatpush1.msra.mxu0 0.0
        %527 = vmatprep.subr.mxu0 0.0
        %528 = vmatpush1.msra.mxu0 0.0
        %529 = vmatprep.subr.mxu0 0.0
        %530 = vmatpush1.msra.mxu0 0.0
        %531 = vmatprep.subr.mxu0 0.0
        %532 = vmatpush1.msra.mxu0 0.0
        %533 = vmatprep.subr.mxu0 0.0
        %534 = vmatpush1.msra.mxu0 0.0
        %535 = vmatprep.subr.mxu0 0.0
        %536 = vmatpush1.msra.mxu0 0.0
        %537 = vmatprep.subr.mxu0 0.0
        %538 = vmatpush1.msra.mxu0 0.0
        %539 = vmatprep.subr.mxu0 0.0
        %540 = vmatpush1.msra.mxu0 0.0
        %541 = vmatprep.subr.mxu0 0.0
        %542 = vmatpush1.msra.mxu0 0.0
        %543 = vmatprep.subr.mxu0 0.0
        %544 = vmatpush1.msra.mxu0 0.0
        %545 = vmatprep.subr.mxu0 0.0
        %546 = vmatpush1.msra.mxu0 0.0
        %547 = vmatprep.subr.mxu0 0.0
        %548 = vmatpush1.msra.mxu0 0.0
        %549 = vmatprep.subr.mxu0 0.0
        %550 = vmatpush1.msra.mxu0 0.0
        %551 = vmatprep.subr.mxu0 0.0
        %552 = vmatpush1.msra.mxu0 0.0
        %553 = vmatprep.subr.mxu0 0.0
        %554 = vmatpush1.msra.mxu0 0.0
        %555 = vmatprep.subr.mxu0 0.0
        %556 = vmatpush1.msra.mxu0 0.0
        %557 = vmatprep.subr.mxu0 0.0
        %558 = vmatpush1.msra.mxu0 0.0
        %559 = vmatprep.subr.mxu0 0.0
        %560 = vmatpush1.msra.mxu0 0.0
        %561 = vmatprep.subr.mxu0 0.0
        %562 = vmatpush1.msra.mxu0 0.0
        %563 = vmatprep.subr.mxu0 0.0
        %564 = vmatpush1.msra.mxu0 0.0
        %565 = vmatprep.subr.mxu0 0.0
        %566 = vmatpush1.msra.mxu0 0.0
        %567 = vmatprep.subr.mxu0 0.0
        %568 = vmatpush1.msra.mxu0 0.0
        %569 = vmatprep.subr.mxu0 0.0
        %570 = vmatpush1.msra.mxu0 0.0
        %571 = vmatprep.mubr.f32.mxu0 0.0
        %572 = vmatmul.mubr.f32.gmra.mrb[0].mxu0 %v295
        %v573 = vpop.f32.mrb[0].mxu0
        %v574 = vadd.f32 0.0, %v573
        %v575 = vpop.f32.mrb[0].mxu0
        %576 = vdwg.mxu0
        %577 = vmatprep.subr.mxu0 0.0
        %578 = vmatpush1.msra.mxu0 %v288
        %579 = vmatprep.subr.mxu0 0.0
        %580 = vmatpush1.msra.mxu0 0.0
        %581 = vmatprep.subr.mxu0 0.0
        %582 = vmatpush1.msra.mxu0 0.0
        %583 = vmatprep.subr.mxu0 0.0
        %584 = vmatpush1.msra.mxu0 0.0
        %585 = vmatprep.subr.mxu0 0.0
        %586 = vmatpush1.msra.mxu0 0.0
        %587 = vmatprep.subr.mxu0 0.0
        %588 = vmatpush1.msra.mxu0 0.0
        %589 = vmatprep.subr.mxu0 0.0
        %590 = vmatpush1.msra.mxu0 0.0
        %591 = vmatprep.subr.mxu0 0.0
        %592 = vmatpush1.msra.mxu0 0.0
        %593 = vmatprep.subr.mxu0 0.0
        %594 = vmatpush1.msra.mxu0 0.0
        %595 = vmatprep.subr.mxu0 0.0
        %596 = vmatpush1.msra.mxu0 0.0
        %597 = vmatprep.subr.mxu0 0.0
        %598 = vmatpush1.msra.mxu0 0.0
        %599 = vmatprep.subr.mxu0 0.0
        %600 = vmatpush1.msra.mxu0 0.0
        %601 = vmatprep.subr.mxu0 0.0
        %602 = vmatpush1.msra.mxu0 0.0
        %603 = vmatprep.subr.mxu0 0.0
        %604 = vmatpush1.msra.mxu0 0.0
        %605 = vmatprep.subr.mxu0 0.0
        %606 = vmatpush1.msra.mxu0 0.0
        %607 = vmatprep.subr.mxu0 0.0
        %608 = vmatpush1.msra.mxu0 0.0
        %609 = vmatprep.subr.mxu0 0.0
        %610 = vmatpush1.msra.mxu0 0.0
        %611 = vmatprep.subr.mxu0 0.0
        %612 = vmatpush1.msra.mxu0 0.0
        %613 = vmatprep.subr.mxu0 0.0
        %614 = vmatpush1.msra.mxu0 0.0
        %615 = vmatprep.subr.mxu0 0.0
        %616 = vmatpush1.msra.mxu0 0.0
        %617 = vmatprep.subr.mxu0 0.0
        %618 = vmatpush1.msra.mxu0 0.0
        %619 = vmatprep.subr.mxu0 0.0
        %620 = vmatpush1.msra.mxu0 0.0
        %621 = vmatprep.subr.mxu0 0.0
        %622 = vmatpush1.msra.mxu0 0.0
        %623 = vmatprep.subr.mxu0 0.0
        %624 = vmatpush1.msra.mxu0 0.0
        %625 = vmatprep.subr.mxu0 0.0
        %626 = vmatpush1.msra.mxu0 0.0
        %627 = vmatprep.subr.mxu0 0.0
        %628 = vmatpush1.msra.mxu0 0.0
        %629 = vmatprep.subr.mxu0 0.0
        %630 = vmatpush1.msra.mxu0 0.0
        %631 = vmatprep.subr.mxu0 0.0
        %632 = vmatpush1.msra.mxu0 0.0
        %633 = vmatprep.subr.mxu0 0.0
        %634 = vmatpush1.msra.mxu0 0.0
        %635 = vmatprep.subr.mxu0 0.0
        %636 = vmatpush1.msra.mxu0 0.0
        %637 = vmatprep.subr.mxu0 0.0
        %638 = vmatpush1.msra.mxu0 0.0
        %639 = vmatprep.subr.mxu0 0.0
        %640 = vmatpush1.msra.mxu0 0.0
        %641 = vmatprep.mubr.f32.mxu0 0.0
        %642 = vmatmul.mubr.f32.gmra.mrb[0].mxu0 %v295
        %v643 = vpop.f32.mrb[0].mxu0
        %v644 = vadd.f32 0.0, %v643
        %v645 = vpop.f32.mrb[0].mxu0
        %646 = vdwg.mxu0
        %647 = vmatprep.subr.mxu0 0.0
        %648 = vmatpush1.msra.mxu0 %v289
        %649 = vmatprep.subr.mxu0 0.0
        %650 = vmatpush1.msra.mxu0 0.0
        %651 = vmatprep.subr.mxu0 0.0
        %652 = vmatpush1.msra.mxu0 0.0
        %653 = vmatprep.subr.mxu0 0.0
        %654 = vmatpush1.msra.mxu0 0.0
        %655 = vmatprep.subr.mxu0 0.0
        %656 = vmatpush1.msra.mxu0 0.0
        %657 = vmatprep.subr.mxu0 0.0
        %658 = vmatpush1.msra.mxu0 0.0
        %659 = vmatprep.subr.mxu0 0.0
        %660 = vmatpush1.msra.mxu0 0.0
        %661 = vmatprep.subr.mxu0 0.0
        %662 = vmatpush1.msra.mxu0 0.0
        %663 = vmatprep.subr.mxu0 0.0
        %664 = vmatpush1.msra.mxu0 0.0
        %665 = vmatprep.subr.mxu0 0.0
        %666 = vmatpush1.msra.mxu0 0.0
        %667 = vmatprep.subr.mxu0 0.0
        %668 = vmatpush1.msra.mxu0 0.0
        %669 = vmatprep.subr.mxu0 0.0
        %670 = vmatpush1.msra.mxu0 0.0
        %671 = vmatprep.subr.mxu0 0.0
        %672 = vmatpush1.msra.mxu0 0.0
        %673 = vmatprep.subr.mxu0 0.0
        %674 = vmatpush1.msra.mxu0 0.0
        %675 = vmatprep.subr.mxu0 0.0
        %676 = vmatpush1.msra.mxu0 0.0
        %677 = vmatprep.subr.mxu0 0.0
        %678 = vmatpush1.msra.mxu0 0.0
        %679 = vmatprep.subr.mxu0 0.0
        %680 = vmatpush1.msra.mxu0 0.0
        %681 = vmatprep.subr.mxu0 0.0
        %682 = vmatpush1.msra.mxu0 0.0
        %683 = vmatprep.subr.mxu0 0.0
        %684 = vmatpush1.msra.mxu0 0.0
        %685 = vmatprep.subr.mxu0 0.0
        %686 = vmatpush1.msra.mxu0 0.0
        %687 = vmatprep.subr.mxu0 0.0
        %688 = vmatpush1.msra.mxu0 0.0
        %689 = vmatprep.subr.mxu0 0.0
        %690 = vmatpush1.msra.mxu0 0.0
        %691 = vmatprep.subr.mxu0 0.0
        %692 = vmatpush1.msra.mxu0 0.0
        %693 = vmatprep.subr.mxu0 0.0
        %694 = vmatpush1.msra.mxu0 0.0
        %695 = vmatprep.subr.mxu0 0.0
        %696 = vmatpush1.msra.mxu0 0.0
        %697 = vmatprep.subr.mxu0 0.0
        %698 = vmatpush1.msra.mxu0 0.0
        %699 = vmatprep.subr.mxu0 0.0
        %700 = vmatpush1.msra.mxu0 0.0
        %701 = vmatprep.subr.mxu0 0.0
        %702 = vmatpush1.msra.mxu0 0.0
        %703 = vmatprep.subr.mxu0 0.0
        %704 = vmatpush1.msra.mxu0 0.0
        %705 = vmatprep.subr.mxu0 0.0
        %706 = vmatpush1.msra.mxu0 0.0
        %707 = vmatprep.subr.mxu0 0.0
        %708 = vmatpush1.msra.mxu0 0.0
        %709 = vmatprep.subr.mxu0 0.0
        %710 = vmatpush1.msra.mxu0 0.0
        %711 = vmatprep.mubr.f32.mxu0 0.0
        %712 = vmatmul.mubr.f32.gmra.mrb[0].mxu0 %v295
        %v713 = vpop.f32.mrb[0].mxu0
        %v714 = vadd.f32 0.0, %v713
        %v715 = vpop.f32.mrb[0].mxu0
        %716 = vdwg.mxu0
        %717 = vmatprep.subr.mxu0 0.0
        %718 = vmatpush1.msra.mxu0 %v290
        %719 = vmatprep.subr.mxu0 0.0
        %720 = vmatpush1.msra.mxu0 0.0
        %721 = vmatprep.subr.mxu0 0.0
        %722 = vmatpush1.msra.mxu0 0.0
        %723 = vmatprep.subr.mxu0 0.0
        %724 = vmatpush1.msra.mxu0 0.0
        %725 = vmatprep.subr.mxu0 0.0
        %726 = vmatpush1.msra.mxu0 0.0
        %727 = vmatprep.subr.mxu0 0.0
        %728 = vmatpush1.msra.mxu0 0.0
        %729 = vmatprep.subr.mxu0 0.0
        %730 = vmatpush1.msra.mxu0 0.0
        %731 = vmatprep.subr.mxu0 0.0
        %732 = vmatpush1.msra.mxu0 0.0
        %733 = vmatprep.subr.mxu0 0.0
        %734 = vmatpush1.msra.mxu0 0.0
        %735 = vmatprep.subr.mxu0 0.0
        %736 = vmatpush1.msra.mxu0 0.0
        %737 = vmatprep.subr.mxu0 0.0
        %738 = vmatpush1.msra.mxu0 0.0
        %739 = vmatprep.subr.mxu0 0.0
        %740 = vmatpush1.msra.mxu0 0.0
        %741 = vmatprep.subr.mxu0 0.0
        %742 = vmatpush1.msra.mxu0 0.0
        %743 = vmatprep.subr.mxu0 0.0
        %744 = vmatpush1.msra.mxu0 0.0
        %745 = vmatprep.subr.mxu0 0.0
        %746 = vmatpush1.msra.mxu0 0.0
        %747 = vmatprep.subr.mxu0 0.0
        %748 = vmatpush1.msra.mxu0 0.0
        %749 = vmatprep.subr.mxu0 0.0
        %750 = vmatpush1.msra.mxu0 0.0
        %751 = vmatprep.subr.mxu0 0.0
        %752 = vmatpush1.msra.mxu0 0.0
        %753 = vmatprep.subr.mxu0 0.0
        %754 = vmatpush1.msra.mxu0 0.0
        %755 = vmatprep.subr.mxu0 0.0
        %756 = vmatpush1.msra.mxu0 0.0
        %757 = vmatprep.subr.mxu0 0.0
        %758 = vmatpush1.msra.mxu0 0.0
        %759 = vmatprep.subr.mxu0 0.0
        %760 = vmatpush1.msra.mxu0 0.0
        %761 = vmatprep.subr.mxu0 0.0
        %762 = vmatpush1.msra.mxu0 0.0
        %763 = vmatprep.subr.mxu0 0.0
        %764 = vmatpush1.msra.mxu0 0.0
        %765 = vmatprep.subr.mxu0 0.0
        %766 = vmatpush1.msra.mxu0 0.0
        %767 = vmatprep.subr.mxu0 0.0
        %768 = vmatpush1.msra.mxu0 0.0
        %769 = vmatprep.subr.mxu0 0.0
        %770 = vmatpush1.msra.mxu0 0.0
        %771 = vmatprep.subr.mxu0 0.0
        %772 = vmatpush1.msra.mxu0 0.0
        %773 = vmatprep.subr.mxu0 0.0
        %774 = vmatpush1.msra.mxu0 0.0
        %775 = vmatprep.subr.mxu0 0.0
        %776 = vmatpush1.msra.mxu0 0.0
        %777 = vmatprep.subr.mxu0 0.0
        %778 = vmatpush1.msra.mxu0 0.0
        %779 = vmatprep.subr.mxu0 0.0
        %780 = vmatpush1.msra.mxu0 0.0
        %781 = vmatprep.mubr.f32.mxu0 0.0
        %782 = vmatmul.mubr.f32.gmra.mrb[0].mxu0 %v295
        %v783 = vpop.f32.mrb[0].mxu0
        %v784 = vadd.f32 0.0, %v783
        %v785 = vpop.f32.mrb[0].mxu0
        %786 = vdwg.mxu0
        %787 = vmatprep.subr.mxu0 0.0
        %788 = vmatpush1.msra.mxu0 %v291
        %789 = vmatprep.subr.mxu0 0.0
        %790 = vmatpush1.msra.mxu0 0.0
        %791 = vmatprep.subr.mxu0 0.0
        %792 = vmatpush1.msra.mxu0 0.0
        %793 = vmatprep.subr.mxu0 0.0
        %794 = vmatpush1.msra.mxu0 0.0
        %795 = vmatprep.subr.mxu0 0.0
        %796 = vmatpush1.msra.mxu0 0.0
        %797 = vmatprep.subr.mxu0 0.0
        %798 = vmatpush1.msra.mxu0 0.0
        %799 = vmatprep.subr.mxu0 0.0
        %800 = vmatpush1.msra.mxu0 0.0
        %801 = vmatprep.subr.mxu0 0.0
        %802 = vmatpush1.msra.mxu0 0.0
        %803 = vmatprep.subr.mxu0 0.0
        %804 = vmatpush1.msra.mxu0 0.0
        %805 = vmatprep.subr.mxu0 0.0
        %806 = vmatpush1.msra.mxu0 0.0
        %807 = vmatprep.subr.mxu0 0.0
        %808 = vmatpush1.msra.mxu0 0.0
        %809 = vmatprep.subr.mxu0 0.0
        %810 = vmatpush1.msra.mxu0 0.0
        %811 = vmatprep.subr.mxu0 0.0
        %812 = vmatpush1.msra.mxu0 0.0
        %813 = vmatprep.subr.mxu0 0.0
        %814 = vmatpush1.msra.mxu0 0.0
        %815 = vmatprep.subr.mxu0 0.0
        %816 = vmatpush1.msra.mxu0 0.0
        %817 = vmatprep.subr.mxu0 0.0
        %818 = vmatpush1.msra.mxu0 0.0
        %819 = vmatprep.subr.mxu0 0.0
        %820 = vmatpush1.msra.mxu0 0.0
        %821 = vmatprep.subr.mxu0 0.0
        %822 = vmatpush1.msra.mxu0 0.0
        %823 = vmatprep.subr.mxu0 0.0
        %824 = vmatpush1.msra.mxu0 0.0
        %825 = vmatprep.subr.mxu0 0.0
        %826 = vmatpush1.msra.mxu0 0.0
        %827 = vmatprep.subr.mxu0 0.0
        %828 = vmatpush1.msra.mxu0 0.0
        %829 = vmatprep.subr.mxu0 0.0
        %830 = vmatpush1.msra.mxu0 0.0
        %831 = vmatprep.subr.mxu0 0.0
        %832 = vmatpush1.msra.mxu0 0.0
        %833 = vmatprep.subr.mxu0 0.0
        %834 = vmatpush1.msra.mxu0 0.0
        %835 = vmatprep.subr.mxu0 0.0
        %836 = vmatpush1.msra.mxu0 0.0
        %837 = vmatprep.subr.mxu0 0.0
        %838 = vmatpush1.msra.mxu0 0.0
        %839 = vmatprep.subr.mxu0 0.0
        %840 = vmatpush1.msra.mxu0 0.0
        %841 = vmatprep.subr.mxu0 0.0
        %842 = vmatpush1.msra.mxu0 0.0
        %843 = vmatprep.subr.mxu0 0.0
        %844 = vmatpush1.msra.mxu0 0.0
        %845 = vmatprep.subr.mxu0 0.0
        %846 = vmatpush1.msra.mxu0 0.0
        %847 = vmatprep.subr.mxu0 0.0
        %848 = vmatpush1.msra.mxu0 0.0
        %849 = vmatprep.subr.mxu0 0.0
        %850 = vmatpush1.msra.mxu0 0.0
        %851 = vmatprep.mubr.f32.mxu0 0.0
        %852 = vmatmul.mubr.f32.gmra.mrb[0].mxu0 %v295
        %v853 = vpop.f32.mrb[0].mxu0
        %v854 = vadd.f32 0.0, %v853
        %v855 = vpop.f32.mrb[0].mxu0
        %856 = vdwg.mxu0
        %857 = vst [vmem:[#allocation2] sm:$0xff] %v364
        %858 = vst [vmem:[#allocation2 + $0x8] sm:$0xff] %v434
        %859 = vst [vmem:[#allocation2 + $0x10] sm:$0xff] %v504
        %860 = vst [vmem:[#allocation2 + $0x18] sm:$0xff] %v574
        %861 = vst [vmem:[#allocation2 + $0x20] sm:$0xff] %v644
        %862 = vst [vmem:[#allocation2 + $0x28] sm:$0xff] %v714
        %863 = vst [vmem:[#allocation2 + $0x30] sm:$0xff] %v784
        %864 = vst [vmem:[#allocation2 + $0x38] sm:$0xff] %v854
      $region40: #{lconv_forward.1} parent=35 // pred_fallthru
        _
      %v865 = vld [vmem:[%s253] sm:$0xff]
      %v866 = vld [vmem:[%s253 + $0x8] sm:$0xff]
      %v867 = vld [vmem:[%s253 + $0x10] sm:$0xff]
      %v868 = vld [vmem:[%s253 + $0x18] sm:$0xff]
      %v869 = vld [vmem:[%s253 + $0x20] sm:$0xff]
      %v870 = vld [vmem:[%s253 + $0x28] sm:$0xff]
      %v871 = vld [vmem:[%s253 + $0x30] sm:$0xff]
      %v872 = vld [vmem:[%s253 + $0x38] sm:$0xff]
      %v873 = vld [vmem:[%s262] sm:$0xff]
      %v874 = vld [vmem:[%s262 + $0x8] sm:$0xff]
      %v875 = vld [vmem:[%s262 + $0x10] sm:$0xff]
      %v876 = vld [vmem:[%s262 + $0x18] sm:$0xff]
      %v877 = vld [vmem:[%s262 + $0x20] sm:$0xff]
      %v878 = vld [vmem:[%s262 + $0x28] sm:$0xff]
      %v879 = vld [vmem:[%s262 + $0x30] sm:$0xff]
      %v880 = vld [vmem:[%s262 + $0x38] sm:$0xff]
      %v881 = vld [vmem:[%s262 + $0x40] sm:$0xff]
      %v882 = vld [vmem:[%s262 + $0x48] sm:$0xff]
      %v883 = vld [vmem:[%s262 + $0x50] sm:$0xff]
      %v884 = vld [vmem:[%s262 + $0x58] sm:$0xff]
      %v885 = vld [vmem:[%s262 + $0x60] sm:$0xff]
      %v886 = vld [vmem:[%s262 + $0x68] sm:$0xff]
      %v887 = vld [vmem:[%s262 + $0x70] sm:$0xff]
      %v888 = vld [vmem:[%s262 + $0x78] sm:$0xff]
      %889 = vmatprep.subr.mxu0 0.0
      %890 = vmatpush1.msra.mxu0 %v873
      %891 = vmatprep.subr.mxu0 0.0
      %892 = vmatpush1.msra.mxu0 %v874
      %893 = vmatprep.subr.mxu0 0.0
      %894 = vmatpush1.msra.mxu0 %v875
      %895 = vmatprep.subr.mxu0 0.0
      %896 = vmatpush1.msra.mxu0 %v876
      %897 = vmatprep.subr.mxu0 0.0
      %898 = vmatpush1.msra.mxu0 %v877
      %899 = vmatprep.subr.mxu0 0.0
      %900 = vmatpush1.msra.mxu0 %v878
      %901 = vmatprep.subr.mxu0 0.0
      %902 = vmatpush1.msra.mxu0 %v879
      %903 = vmatprep.subr.mxu0 0.0
      %904 = vmatpush1.msra.mxu0 %v880
      %905 = vmatprep.subr.mxu0 0.0
      %906 = vmatpush1.msra.mxu0 %v881
      %907 = vmatprep.subr.mxu0 0.0
      %908 = vmatpush1.msra.mxu0 %v882
      %909 = vmatprep.subr.mxu0 0.0
      %910 = vmatpush1.msra.mxu0 %v883
      %911 = vmatprep.subr.mxu0 0.0
      %912 = vmatpush1.msra.mxu0 %v884
      %913 = vmatprep.subr.mxu0 0.0
      %914 = vmatpush1.msra.mxu0 %v885
      %915 = vmatprep.subr.mxu0 0.0
      %916 = vmatpush1.msra.mxu0 %v886
      %917 = vmatprep.subr.mxu0 0.0
      %918 = vmatpush1.msra.mxu0 %v887
      %919 = vmatprep.subr.mxu0 0.0
      %920 = vmatpush1.msra.mxu0 %v888
      %921 = vmatprep.subr.mxu0 0.0
      %922 = vmatpush1.msra.mxu0 0.0
      %923 = vmatprep.subr.mxu0 0.0
      %924 = vmatpush1.msra.mxu0 0.0
      %925 = vmatprep.subr.mxu0 0.0
      %926 = vmatpush1.msra.mxu0 0.0
      %927 = vmatprep.subr.mxu0 0.0
      %928 = vmatpush1.msra.mxu0 0.0
      %929 = vmatprep.subr.mxu0 0.0
      %930 = vmatpush1.msra.mxu0 0.0
      %931 = vmatprep.subr.mxu0 0.0
      %932 = vmatpush1.msra.mxu0 0.0
      %933 = vmatprep.subr.mxu0 0.0
      %934 = vmatpush1.msra.mxu0 0.0
      %935 = vmatprep.subr.mxu0 0.0
      %936 = vmatpush1.msra.mxu0 0.0
      %937 = vmatprep.subr.mxu0 0.0
      %938 = vmatpush1.msra.mxu0 0.0
      %939 = vmatprep.subr.mxu0 0.0
      %940 = vmatpush1.msra.mxu0 0.0
      %941 = vmatprep.subr.mxu0 0.0
      %942 = vmatpush1.msra.mxu0 0.0
      %943 = vmatprep.subr.mxu0 0.0
      %944 = vmatpush1.msra.mxu0 0.0
      %945 = vmatprep.subr.mxu0 0.0
      %946 = vmatpush1.msra.mxu0 0.0
      %947 = vmatprep.subr.mxu0 0.0
      %948 = vmatpush1.msra.mxu0 0.0
      %949 = vmatprep.subr.mxu0 0.0
      %950 = vmatpush1.msra.mxu0 0.0
      %951 = vmatprep.subr.mxu0 0.0
      %952 = vmatpush1.msra.mxu0 0.0
      %953 = vmatprep.mubr.f32.mxu0 0.0
      %954 = vmatmul.mubr.f32.gmra.mrb[0].mxu0 %v865
      %v955 = vpop.f32.mrb[0].mxu0
      %v956 = vadd.f32 0.0, %v955
      %v957 = vpop.f32.mrb[0].mxu0
      %958 = vmatprep.mubr.f32.mxu0 0.0
      %959 = vmatmul.mubr.f32.gmra.mrb[0].mxu0 %v866
      %v960 = vpop.f32.mrb[0].mxu0
      %v961 = vadd.f32 0.0, %v960
      %v962 = vpop.f32.mrb[0].mxu0
      %963 = vmatprep.mubr.f32.mxu0 0.0
      %964 = vmatmul.mubr.f32.gmra.mrb[0].mxu0 %v867
      %v965 = vpop.f32.mrb[0].mxu0
      %v966 = vadd.f32 0.0, %v965
      %v967 = vpop.f32.mrb[0].mxu0
      %968 = vmatprep.mubr.f32.mxu0 0.0
      %969 = vmatmul.mubr.f32.gmra.mrb[0].mxu0 %v868
      %v970 = vpop.f32.mrb[0].mxu0
      %v971 = vadd.f32 0.0, %v970
      %v972 = vpop.f32.mrb[0].mxu0
      %973 = vmatprep.mubr.f32.mxu0 0.0
      %974 = vmatmul.mubr.f32.gmra.mrb[0].mxu0 %v869
      %v975 = vpop.f32.mrb[0].mxu0
      %v976 = vadd.f32 0.0, %v975
      %v977 = vpop.f32.mrb[0].mxu0
      %978 = vmatprep.mubr.f32.mxu0 0.0
      %979 = vmatmul.mubr.f32.gmra.mrb[0].mxu0 %v870
      %v980 = vpop.f32.mrb[0].mxu0
      %v981 = vadd.f32 0.0, %v980
      %v982 = vpop.f32.mrb[0].mxu0
      %983 = vmatprep.mubr.f32.mxu0 0.0
      %984 = vmatmul.mubr.f32.gmra.mrb[0].mxu0 %v871
      %v985 = vpop.f32.mrb[0].mxu0
      %v986 = vadd.f32 0.0, %v985
      %v987 = vpop.f32.mrb[0].mxu0
      %988 = vmatprep.mubr.f32.mxu0 0.0
      %989 = vmatmul.mubr.f32.gmra.mrb[0].mxu0 %v872
      %v990 = vpop.f32.mrb[0].mxu0
      %v991 = vadd.f32 0.0, %v990
      %v992 = vpop.f32.mrb[0].mxu0
      %993 = vdwg.mxu0
      %v994 = vld [vmem:[%s266] sm:$0xff]
      %v995 = vld [vmem:[#allocation2] sm:$0xff]
      %v996 = vld [vmem:[#allocation2 + $0x8] sm:$0xff]
      %v997 = vld [vmem:[#allocation2 + $0x10] sm:$0xff]
      %v998 = vld [vmem:[#allocation2 + $0x18] sm:$0xff]
      %v999 = vld [vmem:[#allocation2 + $0x20] sm:$0xff]
      %v1000 = vld [vmem:[#allocation2 + $0x28] sm:$0xff]
      %v1001 = vld [vmem:[#allocation2 + $0x30] sm:$0xff]
      %v1002 = vld [vmem:[#allocation2 + $0x38] sm:$0xff]
      %vm1003 = vcmask 64512
      %v1005 = vsel %vm1003, %v994, 0
      %1007 = vmatprep.subr.mxu0 0.0
      %1008 = vmatpush1.msra.mxu0 %v956
      %1009 = vmatprep.subr.mxu0 0.0
      %1010 = vmatpush1.msra.mxu0 0.0
      %1011 = vmatprep.subr.mxu0 0.0
      %1012 = vmatpush1.msra.mxu0 0.0
      %1013 = vmatprep.subr.mxu0 0.0
      %1014 = vmatpush1.msra.mxu0 0.0
      %1015 = vmatprep.subr.mxu0 0.0
      %1016 = vmatpush1.msra.mxu0 0.0
      %1017 = vmatprep.subr.mxu0 0.0
      %1018 = vmatpush1.msra.mxu0 0.0
      %1019 = vmatprep.subr.mxu0 0.0
      %1020 = vmatpush1.msra.mxu0 0.0
      %1021 = vmatprep.subr.mxu0 0.0
      %1022 = vmatpush1.msra.mxu0 0.0
      %1023 = vmatprep.subr.mxu0 0.0
      %1024 = vmatpush1.msra.mxu0 0.0
      %1025 = vmatprep.subr.mxu0 0.0
      %1026 = vmatpush1.msra.mxu0 0.0
      %1027 = vmatprep.subr.mxu0 0.0
      %1028 = vmatpush1.msra.mxu0 0.0
      %1029 = vmatprep.subr.mxu0 0.0
      %1030 = vmatpush1.msra.mxu0 0.0
      %1031 = vmatprep.subr.mxu0 0.0
      %1032 = vmatpush1.msra.mxu0 0.0
      %1033 = vmatprep.subr.mxu0 0.0
      %1034 = vmatpush1.msra.mxu0 0.0
      %1035 = vmatprep.subr.mxu0 0.0
      %1036 = vmatpush1.msra.mxu0 0.0
      %1037 = vmatprep.subr.mxu0 0.0
      %1038 = vmatpush1.msra.mxu0 0.0
      %1039 = vmatprep.subr.mxu0 0.0
      %1040 = vmatpush1.msra.mxu0 0.0
      %1041 = vmatprep.subr.mxu0 0.0
      %1042 = vmatpush1.msra.mxu0 0.0
      %1043 = vmatprep.subr.mxu0 0.0
      %1044 = vmatpush1.msra.mxu0 0.0
      %1045 = vmatprep.subr.mxu0 0.0
      %1046 = vmatpush1.msra.mxu0 0.0
      %1047 = vmatprep.subr.mxu0 0.0
      %1048 = vmatpush1.msra.mxu0 0.0
      %1049 = vmatprep.subr.mxu0 0.0
      %1050 = vmatpush1.msra.mxu0 0.0
      %1051 = vmatprep.subr.mxu0 0.0
      %1052 = vmatpush1.msra.mxu0 0.0
      %1053 = vmatprep.subr.mxu0 0.0
      %1054 = vmatpush1.msra.mxu0 0.0
      %1055 = vmatprep.subr.mxu0 0.0
      %1056 = vmatpush1.msra.mxu0 0.0
      %1057 = vmatprep.subr.mxu0 0.0
      %1058 = vmatpush1.msra.mxu0 0.0
      %1059 = vmatprep.subr.mxu0 0.0
      %1060 = vmatpush1.msra.mxu0 0.0
      %1061 = vmatprep.subr.mxu0 0.0
      %1062 = vmatpush1.msra.mxu0 0.0
      %1063 = vmatprep.subr.mxu0 0.0
      %1064 = vmatpush1.msra.mxu0 0.0
      %1065 = vmatprep.subr.mxu0 0.0
      %1066 = vmatpush1.msra.mxu0 0.0
      %1067 = vmatprep.subr.mxu0 0.0
      %1068 = vmatpush1.msra.mxu0 0.0
      %1069 = vmatprep.subr.mxu0 0.0
      %1070 = vmatpush1.msra.mxu0 0.0
      %1071 = vmatprep.mubr.f32.mxu0 0.0
      %1072 = vmatmul.mubr.f32.gmra.mrb[0].mxu0 %v1005
      %v1073 = vpop.f32.mrb[0].mxu0
      %v1074 = vadd.f32 0.0, %v1073
      %v1075 = vpop.f32.mrb[0].mxu0
      %1076 = vdwg.mxu0
      %1077 = vmatprep.subr.mxu0 0.0
      %1078 = vmatpush1.msra.mxu0 %v961
      %1079 = vmatprep.subr.mxu0 0.0
      %1080 = vmatpush1.msra.mxu0 0.0
      %1081 = vmatprep.subr.mxu0 0.0
      %1082 = vmatpush1.msra.mxu0 0.0
      %1083 = vmatprep.subr.mxu0 0.0
      %1084 = vmatpush1.msra.mxu0 0.0
      %1085 = vmatprep.subr.mxu0 0.0
      %1086 = vmatpush1.msra.mxu0 0.0
      %1087 = vmatprep.subr.mxu0 0.0
      %1088 = vmatpush1.msra.mxu0 0.0
      %1089 = vmatprep.subr.mxu0 0.0
      %1090 = vmatpush1.msra.mxu0 0.0
      %1091 = vmatprep.subr.mxu0 0.0
      %1092 = vmatpush1.msra.mxu0 0.0
      %1093 = vmatprep.subr.mxu0 0.0
      %1094 = vmatpush1.msra.mxu0 0.0
      %1095 = vmatprep.subr.mxu0 0.0
      %1096 = vmatpush1.msra.mxu0 0.0
      %1097 = vmatprep.subr.mxu0 0.0
      %1098 = vmatpush1.msra.mxu0 0.0
      %1099 = vmatprep.subr.mxu0 0.0
      %1100 = vmatpush1.msra.mxu0 0.0
      %1101 = vmatprep.subr.mxu0 0.0
      %1102 = vmatpush1.msra.mxu0 0.0
      %1103 = vmatprep.subr.mxu0 0.0
      %1104 = vmatpush1.msra.mxu0 0.0
      %1105 = vmatprep.subr.mxu0 0.0
      %1106 = vmatpush1.msra.mxu0 0.0
      %1107 = vmatprep.subr.mxu0 0.0
      %1108 = vmatpush1.msra.mxu0 0.0
      %1109 = vmatprep.subr.mxu0 0.0
      %1110 = vmatpush1.msra.mxu0 0.0
      %1111 = vmatprep.subr.mxu0 0.0
      %1112 = vmatpush1.msra.mxu0 0.0
      %1113 = vmatprep.subr.mxu0 0.0
      %1114 = vmatpush1.msra.mxu0 0.0
      %1115 = vmatprep.subr.mxu0 0.0
      %1116 = vmatpush1.msra.mxu0 0.0
      %1117 = vmatprep.subr.mxu0 0.0
      %1118 = vmatpush1.msra.mxu0 0.0
      %1119 = vmatprep.subr.mxu0 0.0
      %1120 = vmatpush1.msra.mxu0 0.0
      %1121 = vmatprep.subr.mxu0 0.0
      %1122 = vmatpush1.msra.mxu0 0.0
      %1123 = vmatprep.subr.mxu0 0.0
      %1124 = vmatpush1.msra.mxu0 0.0
      %1125 = vmatprep.subr.mxu0 0.0
      %1126 = vmatpush1.msra.mxu0 0.0
      %1127 = vmatprep.subr.mxu0 0.0
      %1128 = vmatpush1.msra.mxu0 0.0
      %1129 = vmatprep.subr.mxu0 0.0
      %1130 = vmatpush1.msra.mxu0 0.0
      %1131 = vmatprep.subr.mxu0 0.0
      %1132 = vmatpush1.msra.mxu0 0.0
      %1133 = vmatprep.subr.mxu0 0.0
      %1134 = vmatpush1.msra.mxu0 0.0
      %1135 = vmatprep.subr.mxu0 0.0
      %1136 = vmatpush1.msra.mxu0 0.0
      %1137 = vmatprep.subr.mxu0 0.0
      %1138 = vmatpush1.msra.mxu0 0.0
      %1139 = vmatprep.subr.mxu0 0.0
      %1140 = vmatpush1.msra.mxu0 0.0
      %1141 = vmatprep.mubr.f32.mxu0 0.0
      %1142 = vmatmul.mubr.f32.gmra.mrb[0].mxu0 %v1005
      %v1143 = vpop.f32.mrb[0].mxu0
      %v1144 = vadd.f32 0.0, %v1143
      %v1145 = vpop.f32.mrb[0].mxu0
      %1146 = vdwg.mxu0
      %1147 = vmatprep.subr.mxu0 0.0
      %1148 = vmatpush1.msra.mxu0 %v966
      %1149 = vmatprep.subr.mxu0 0.0
      %1150 = vmatpush1.msra.mxu0 0.0
      %1151 = vmatprep.subr.mxu0 0.0
      %1152 = vmatpush1.msra.mxu0 0.0
      %1153 = vmatprep.subr.mxu0 0.0
      %1154 = vmatpush1.msra.mxu0 0.0
      %1155 = vmatprep.subr.mxu0 0.0
      %1156 = vmatpush1.msra.mxu0 0.0
      %1157 = vmatprep.subr.mxu0 0.0
      %1158 = vmatpush1.msra.mxu0 0.0
      %1159 = vmatprep.subr.mxu0 0.0
      %1160 = vmatpush1.msra.mxu0 0.0
      %1161 = vmatprep.subr.mxu0 0.0
      %1162 = vmatpush1.msra.mxu0 0.0
      %1163 = vmatprep.subr.mxu0 0.0
      %1164 = vmatpush1.msra.mxu0 0.0
      %1165 = vmatprep.subr.mxu0 0.0
      %1166 = vmatpush1.msra.mxu0 0.0
      %1167 = vmatprep.subr.mxu0 0.0
      %1168 = vmatpush1.msra.mxu0 0.0
      %1169 = vmatprep.subr.mxu0 0.0
      %1170 = vmatpush1.msra.mxu0 0.0
      %1171 = vmatprep.subr.mxu0 0.0
      %1172 = vmatpush1.msra.mxu0 0.0
      %1173 = vmatprep.subr.mxu0 0.0
      %1174 = vmatpush1.msra.mxu0 0.0
      %1175 = vmatprep.subr.mxu0 0.0
      %1176 = vmatpush1.msra.mxu0 0.0
      %1177 = vmatprep.subr.mxu0 0.0
      %1178 = vmatpush1.msra.mxu0 0.0
      %1179 = vmatprep.subr.mxu0 0.0
      %1180 = vmatpush1.msra.mxu0 0.0
      %1181 = vmatprep.subr.mxu0 0.0
      %1182 = vmatpush1.msra.mxu0 0.0
      %1183 = vmatprep.subr.mxu0 0.0
      %1184 = vmatpush1.msra.mxu0 0.0
      %1185 = vmatprep.subr.mxu0 0.0
      %1186 = vmatpush1.msra.mxu0 0.0
      %1187 = vmatprep.subr.mxu0 0.0
      %1188 = vmatpush1.msra.mxu0 0.0
      %1189 = vmatprep.subr.mxu0 0.0
      %1190 = vmatpush1.msra.mxu0 0.0
      %1191 = vmatprep.subr.mxu0 0.0
      %1192 = vmatpush1.msra.mxu0 0.0
      %1193 = vmatprep.subr.mxu0 0.0
      %1194 = vmatpush1.msra.mxu0 0.0
      %1195 = vmatprep.subr.mxu0 0.0
      %1196 = vmatpush1.msra.mxu0 0.0
      %1197 = vmatprep.subr.mxu0 0.0
      %1198 = vmatpush1.msra.mxu0 0.0
      %1199 = vmatprep.subr.mxu0 0.0
      %1200 = vmatpush1.msra.mxu0 0.0
      %1201 = vmatprep.subr.mxu0 0.0
      %1202 = vmatpush1.msra.mxu0 0.0
      %1203 = vmatprep.subr.mxu0 0.0
      %1204 = vmatpush1.msra.mxu0 0.0
      %1205 = vmatprep.subr.mxu0 0.0
      %1206 = vmatpush1.msra.mxu0 0.0
      %1207 = vmatprep.subr.mxu0 0.0
      %1208 = vmatpush1.msra.mxu0 0.0
      %1209 = vmatprep.subr.mxu0 0.0
      %1210 = vmatpush1.msra.mxu0 0.0
      %1211 = vmatprep.mubr.f32.mxu0 0.0
      %1212 = vmatmul.mubr.f32.gmra.mrb[0].mxu0 %v1005
      %v1213 = vpop.f32.mrb[0].mxu0
      %v1214 = vadd.f32 0.0, %v1213
      %v1215 = vpop.f32.mrb[0].mxu0
      %1216 = vdwg.mxu0
      %1217 = vmatprep.subr.mxu0 0.0
      %1218 = vmatpush1.msra.mxu0 %v971
      %1219 = vmatprep.subr.mxu0 0.0
      %1220 = vmatpush1.msra.mxu0 0.0
      %1221 = vmatprep.subr.mxu0 0.0
      %1222 = vmatpush1.msra.mxu0 0.0
      %1223 = vmatprep.subr.mxu0 0.0
      %1224 = vmatpush1.msra.mxu0 0.0
      %1225 = vmatprep.subr.mxu0 0.0
      %1226 = vmatpush1.msra.mxu0 0.0
      %1227 = vmatprep.subr.mxu0 0.0
      %1228 = vmatpush1.msra.mxu0 0.0
      %1229 = vmatprep.subr.mxu0 0.0
      %1230 = vmatpush1.msra.mxu0 0.0
      %1231 = vmatprep.subr.mxu0 0.0
      %1232 = vmatpush1.msra.mxu0 0.0
      %1233 = vmatprep.subr.mxu0 0.0
      %1234 = vmatpush1.msra.mxu0 0.0
      %1235 = vmatprep.subr.mxu0 0.0
      %1236 = vmatpush1.msra.mxu0 0.0
      %1237 = vmatprep.subr.mxu0 0.0
      %1238 = vmatpush1.msra.mxu0 0.0
      %1239 = vmatprep.subr.mxu0 0.0
      %1240 = vmatpush1.msra.mxu0 0.0
      %1241 = vmatprep.subr.mxu0 0.0
      %1242 = vmatpush1.msra.mxu0 0.0
      %1243 = vmatprep.subr.mxu0 0.0
      %1244 = vmatpush1.msra.mxu0 0.0
      %1245 = vmatprep.subr.mxu0 0.0
      %1246 = vmatpush1.msra.mxu0 0.0
      %1247 = vmatprep.subr.mxu0 0.0
      %1248 = vmatpush1.msra.mxu0 0.0
      %1249 = vmatprep.subr.mxu0 0.0
      %1250 = vmatpush1.msra.mxu0 0.0
      %1251 = vmatprep.subr.mxu0 0.0
      %1252 = vmatpush1.msra.mxu0 0.0
      %1253 = vmatprep.subr.mxu0 0.0
      %1254 = vmatpush1.msra.mxu0 0.0
      %1255 = vmatprep.subr.mxu0 0.0
      %1256 = vmatpush1.msra.mxu0 0.0
      %1257 = vmatprep.subr.mxu0 0.0
      %1258 = vmatpush1.msra.mxu0 0.0
      %1259 = vmatprep.subr.mxu0 0.0
      %1260 = vmatpush1.msra.mxu0 0.0
      %1261 = vmatprep.subr.mxu0 0.0
      %1262 = vmatpush1.msra.mxu0 0.0
      %1263 = vmatprep.subr.mxu0 0.0
      %1264 = vmatpush1.msra.mxu0 0.0
      %1265 = vmatprep.subr.mxu0 0.0
      %1266 = vmatpush1.msra.mxu0 0.0
      %1267 = vmatprep.subr.mxu0 0.0
      %1268 = vmatpush1.msra.mxu0 0.0
      %1269 = vmatprep.subr.mxu0 0.0
      %1270 = vmatpush1.msra.mxu0 0.0
      %1271 = vmatprep.subr.mxu0 0.0
      %1272 = vmatpush1.msra.mxu0 0.0
      %1273 = vmatprep.subr.mxu0 0.0
      %1274 = vmatpush1.msra.mxu0 0.0
      %1275 = vmatprep.subr.mxu0 0.0
      %1276 = vmatpush1.msra.mxu0 0.0
      %1277 = vmatprep.subr.mxu0 0.0
      %1278 = vmatpush1.msra.mxu0 0.0
      %1279 = vmatprep.subr.mxu0 0.0
      %1280 = vmatpush1.msra.mxu0 0.0
      %1281 = vmatprep.mubr.f32.mxu0 0.0
      %1282 = vmatmul.mubr.f32.gmra.mrb[0].mxu0 %v1005
      %v1283 = vpop.f32.mrb[0].mxu0
      %v1284 = vadd.f32 0.0, %v1283
      %v1285 = vpop.f32.mrb[0].mxu0
      %1286 = vdwg.mxu0
      %1287 = vmatprep.subr.mxu0 0.0
      %1288 = vmatpush1.msra.mxu0 %v976
      %1289 = vmatprep.subr.mxu0 0.0
      %1290 = vmatpush1.msra.mxu0 0.0
      %1291 = vmatprep.subr.mxu0 0.0
      %1292 = vmatpush1.msra.mxu0 0.0
      %1293 = vmatprep.subr.mxu0 0.0
      %1294 = vmatpush1.msra.mxu0 0.0
      %1295 = vmatprep.subr.mxu0 0.0
      %1296 = vmatpush1.msra.mxu0 0.0
      %1297 = vmatprep.subr.mxu0 0.0
      %1298 = vmatpush1.msra.mxu0 0.0
      %1299 = vmatprep.subr.mxu0 0.0
      %1300 = vmatpush1.msra.mxu0 0.0
      %1301 = vmatprep.subr.mxu0 0.0
      %1302 = vmatpush1.msra.mxu0 0.0
      %1303 = vmatprep.subr.mxu0 0.0
      %1304 = vmatpush1.msra.mxu0 0.0
      %1305 = vmatprep.subr.mxu0 0.0
      %1306 = vmatpush1.msra.mxu0 0.0
      %1307 = vmatprep.subr.mxu0 0.0
      %1308 = vmatpush1.msra.mxu0 0.0
      %1309 = vmatprep.subr.mxu0 0.0
      %1310 = vmatpush1.msra.mxu0 0.0
      %1311 = vmatprep.subr.mxu0 0.0
      %1312 = vmatpush1.msra.mxu0 0.0
      %1313 = vmatprep.subr.mxu0 0.0
      %1314 = vmatpush1.msra.mxu0 0.0
      %1315 = vmatprep.subr.mxu0 0.0
      %1316 = vmatpush1.msra.mxu0 0.0
      %1317 = vmatprep.subr.mxu0 0.0
      %1318 = vmatpush1.msra.mxu0 0.0
      %1319 = vmatprep.subr.mxu0 0.0
      %1320 = vmatpush1.msra.mxu0 0.0
      %1321 = vmatprep.subr.mxu0 0.0
      %1322 = vmatpush1.msra.mxu0 0.0
      %1323 = vmatprep.subr.mxu0 0.0
      %1324 = vmatpush1.msra.mxu0 0.0
      %1325 = vmatprep.subr.mxu0 0.0
      %1326 = vmatpush1.msra.mxu0 0.0
      %1327 = vmatprep.subr.mxu0 0.0
      %1328 = vmatpush1.msra.mxu0 0.0
      %1329 = vmatprep.subr.mxu0 0.0
      %1330 = vmatpush1.msra.mxu0 0.0
      %1331 = vmatprep.subr.mxu0 0.0
      %1332 = vmatpush1.msra.mxu0 0.0
      %1333 = vmatprep.subr.mxu0 0.0
      %1334 = vmatpush1.msra.mxu0 0.0
      %1335 = vmatprep.subr.mxu0 0.0
      %1336 = vmatpush1.msra.mxu0 0.0
      %1337 = vmatprep.subr.mxu0 0.0
      %1338 = vmatpush1.msra.mxu0 0.0
      %1339 = vmatprep.subr.mxu0 0.0
      %1340 = vmatpush1.msra.mxu0 0.0
      %1341 = vmatprep.subr.mxu0 0.0
      %1342 = vmatpush1.msra.mxu0 0.0
      %1343 = vmatprep.subr.mxu0 0.0
      %1344 = vmatpush1.msra.mxu0 0.0
      %1345 = vmatprep.subr.mxu0 0.0
      %1346 = vmatpush1.msra.mxu0 0.0
      %1347 = vmatprep.subr.mxu0 0.0
      %1348 = vmatpush1.msra.mxu0 0.0
      %1349 = vmatprep.subr.mxu0 0.0
      %1350 = vmatpush1.msra.mxu0 0.0
      %1351 = vmatprep.mubr.f32.mxu0 0.0
      %1352 = vmatmul.mubr.f32.gmra.mrb[0].mxu0 %v1005
      %v1353 = vpop.f32.mrb[0].mxu0
      %v1354 = vadd.f32 0.0, %v1353
      %v1355 = vpop.f32.mrb[0].mxu0
      %1356 = vdwg.mxu0
      %1357 = vmatprep.subr.mxu0 0.0
      %1358 = vmatpush1.msra.mxu0 %v981
      %1359 = vmatprep.subr.mxu0 0.0
      %1360 = vmatpush1.msra.mxu0 0.0
      %1361 = vmatprep.subr.mxu0 0.0
      %1362 = vmatpush1.msra.mxu0 0.0
      %1363 = vmatprep.subr.mxu0 0.0
      %1364 = vmatpush1.msra.mxu0 0.0
      %1365 = vmatprep.subr.mxu0 0.0
      %1366 = vmatpush1.msra.mxu0 0.0
      %1367 = vmatprep.subr.mxu0 0.0
      %1368 = vmatpush1.msra.mxu0 0.0
      %1369 = vmatprep.subr.mxu0 0.0
      %1370 = vmatpush1.msra.mxu0 0.0
      %1371 = vmatprep.subr.mxu0 0.0
      %1372 = vmatpush1.msra.mxu0 0.0
      %1373 = vmatprep.subr.mxu0 0.0
      %1374 = vmatpush1.msra.mxu0 0.0
      %1375 = vmatprep.subr.mxu0 0.0
      %1376 = vmatpush1.msra.mxu0 0.0
      %1377 = vmatprep.subr.mxu0 0.0
      %1378 = vmatpush1.msra.mxu0 0.0
      %1379 = vmatprep.subr.mxu0 0.0
      %1380 = vmatpush1.msra.mxu0 0.0
      %1381 = vmatprep.subr.mxu0 0.0
      %1382 = vmatpush1.msra.mxu0 0.0
      %1383 = vmatprep.subr.mxu0 0.0
      %1384 = vmatpush1.msra.mxu0 0.0
      %1385 = vmatprep.subr.mxu0 0.0
      %1386 = vmatpush1.msra.mxu0 0.0
      %1387 = vmatprep.subr.mxu0 0.0
      %1388 = vmatpush1.msra.mxu0 0.0
      %1389 = vmatprep.subr.mxu0 0.0
      %1390 = vmatpush1.msra.mxu0 0.0
      %1391 = vmatprep.subr.mxu0 0.0
      %1392 = vmatpush1.msra.mxu0 0.0
      %1393 = vmatprep.subr.mxu0 0.0
      %1394 = vmatpush1.msra.mxu0 0.0
      %1395 = vmatprep.subr.mxu0 0.0
      %1396 = vmatpush1.msra.mxu0 0.0
      %1397 = vmatprep.subr.mxu0 0.0
      %1398 = vmatpush1.msra.mxu0 0.0
      %1399 = vmatprep.subr.mxu0 0.0
      %1400 = vmatpush1.msra.mxu0 0.0
      %1401 = vmatprep.subr.mxu0 0.0
      %1402 = vmatpush1.msra.mxu0 0.0
      %1403 = vmatprep.subr.mxu0 0.0
      %1404 = vmatpush1.msra.mxu0 0.0
      %1405 = vmatprep.subr.mxu0 0.0
      %1406 = vmatpush1.msra.mxu0 0.0
      %1407 = vmatprep.subr.mxu0 0.0
      %1408 = vmatpush1.msra.mxu0 0.0
      %1409 = vmatprep.subr.mxu0 0.0
      %1410 = vmatpush1.msra.mxu0 0.0
      %1411 = vmatprep.subr.mxu0 0.0
      %1412 = vmatpush1.msra.mxu0 0.0
      %1413 = vmatprep.subr.mxu0 0.0
      %1414 = vmatpush1.msra.mxu0 0.0
      %1415 = vmatprep.subr.mxu0 0.0
      %1416 = vmatpush1.msra.mxu0 0.0
      %1417 = vmatprep.subr.mxu0 0.0
      %1418 = vmatpush1.msra.mxu0 0.0
      %1419 = vmatprep.subr.mxu0 0.0
      %1420 = vmatpush1.msra.mxu0 0.0
      %1421 = vmatprep.mubr.f32.mxu0 0.0
      %1422 = vmatmul.mubr.f32.gmra.mrb[0].mxu0 %v1005
      %v1423 = vpop.f32.mrb[0].mxu0
      %v1424 = vadd.f32 0.0, %v1423
      %v1425 = vpop.f32.mrb[0].mxu0
      %1426 = vdwg.mxu0
      %1427 = vmatprep.subr.mxu0 0.0
      %1428 = vmatpush1.msra.mxu0 %v986
      %1429 = vmatprep.subr.mxu0 0.0
      %1430 = vmatpush1.msra.mxu0 0.0
      %1431 = vmatprep.subr.mxu0 0.0
      %1432 = vmatpush1.msra.mxu0 0.0
      %1433 = vmatprep.subr.mxu0 0.0
      %1434 = vmatpush1.msra.mxu0 0.0
      %1435 = vmatprep.subr.mxu0 0.0
      %1436 = vmatpush1.msra.mxu0 0.0
      %1437 = vmatprep.subr.mxu0 0.0
      %1438 = vmatpush1.msra.mxu0 0.0
      %1439 = vmatprep.subr.mxu0 0.0
      %1440 = vmatpush1.msra.mxu0 0.0
      %1441 = vmatprep.subr.mxu0 0.0
      %1442 = vmatpush1.msra.mxu0 0.0
      %1443 = vmatprep.subr.mxu0 0.0
      %1444 = vmatpush1.msra.mxu0 0.0
      %1445 = vmatprep.subr.mxu0 0.0
      %1446 = vmatpush1.msra.mxu0 0.0
      %1447 = vmatprep.subr.mxu0 0.0
      %1448 = vmatpush1.msra.mxu0 0.0
      %1449 = vmatprep.subr.mxu0 0.0
      %1450 = vmatpush1.msra.mxu0 0.0
      %1451 = vmatprep.subr.mxu0 0.0
      %1452 = vmatpush1.msra.mxu0 0.0
      %1453 = vmatprep.subr.mxu0 0.0
      %1454 = vmatpush1.msra.mxu0 0.0
      %1455 = vmatprep.subr.mxu0 0.0
      %1456 = vmatpush1.msra.mxu0 0.0
      %1457 = vmatprep.subr.mxu0 0.0
      %1458 = vmatpush1.msra.mxu0 0.0
      %1459 = vmatprep.subr.mxu0 0.0
      %1460 = vmatpush1.msra.mxu0 0.0
      %1461 = vmatprep.subr.mxu0 0.0
      %1462 = vmatpush1.msra.mxu0 0.0
      %1463 = vmatprep.subr.mxu0 0.0
      %1464 = vmatpush1.msra.mxu0 0.0
      %1465 = vmatprep.subr.mxu0 0.0
      %1466 = vmatpush1.msra.mxu0 0.0
      %1467 = vmatprep.subr.mxu0 0.0
      %1468 = vmatpush1.msra.mxu0 0.0
      %1469 = vmatprep.subr.mxu0 0.0
      %1470 = vmatpush1.msra.mxu0 0.0
      %1471 = vmatprep.subr.mxu0 0.0
      %1472 = vmatpush1.msra.mxu0 0.0
      %1473 = vmatprep.subr.mxu0 0.0
      %1474 = vmatpush1.msra.mxu0 0.0
      %1475 = vmatprep.subr.mxu0 0.0
      %1476 = vmatpush1.msra.mxu0 0.0
      %1477 = vmatprep.subr.mxu0 0.0
      %1478 = vmatpush1.msra.mxu0 0.0
      %1479 = vmatprep.subr.mxu0 0.0
      %1480 = vmatpush1.msra.mxu0 0.0
      %1481 = vmatprep.subr.mxu0 0.0
      %1482 = vmatpush1.msra.mxu0 0.0
      %1483 = vmatprep.subr.mxu0 0.0
      %1484 = vmatpush1.msra.mxu0 0.0
      %1485 = vmatprep.subr.mxu0 0.0
      %1486 = vmatpush1.msra.mxu0 0.0
      %1487 = vmatprep.subr.mxu0 0.0
      %1488 = vmatpush1.msra.mxu0 0.0
      %1489 = vmatprep.subr.mxu0 0.0
      %1490 = vmatpush1.msra.mxu0 0.0
      %1491 = vmatprep.mubr.f32.mxu0 0.0
      %1492 = vmatmul.mubr.f32.gmra.mrb[0].mxu0 %v1005
      %v1493 = vpop.f32.mrb[0].mxu0
      %v1494 = vadd.f32 0.0, %v1493
      %v1495 = vpop.f32.mrb[0].mxu0
      %1496 = vdwg.mxu0
      %1497 = vmatprep.subr.mxu0 0.0
      %1498 = vmatpush1.msra.mxu0 %v991
      %1499 = vmatprep.subr.mxu0 0.0
      %1500 = vmatpush1.msra.mxu0 0.0
      %1501 = vmatprep.subr.mxu0 0.0
      %1502 = vmatpush1.msra.mxu0 0.0
      %1503 = vmatprep.subr.mxu0 0.0
      %1504 = vmatpush1.msra.mxu0 0.0
      %1505 = vmatprep.subr.mxu0 0.0
      %1506 = vmatpush1.msra.mxu0 0.0
      %1507 = vmatprep.subr.mxu0 0.0
      %1508 = vmatpush1.msra.mxu0 0.0
      %1509 = vmatprep.subr.mxu0 0.0
      %1510 = vmatpush1.msra.mxu0 0.0
      %1511 = vmatprep.subr.mxu0 0.0
      %1512 = vmatpush1.msra.mxu0 0.0
      %1513 = vmatprep.subr.mxu0 0.0
      %1514 = vmatpush1.msra.mxu0 0.0
      %1515 = vmatprep.subr.mxu0 0.0
      %1516 = vmatpush1.msra.mxu0 0.0
      %1517 = vmatprep.subr.mxu0 0.0
      %1518 = vmatpush1.msra.mxu0 0.0
      %1519 = vmatprep.subr.mxu0 0.0
      %1520 = vmatpush1.msra.mxu0 0.0
      %1521 = vmatprep.subr.mxu0 0.0
      %1522 = vmatpush1.msra.mxu0 0.0
      %1523 = vmatprep.subr.mxu0 0.0
      %1524 = vmatpush1.msra.mxu0 0.0
      %1525 = vmatprep.subr.mxu0 0.0
      %1526 = vmatpush1.msra.mxu0 0.0
      %1527 = vmatprep.subr.mxu0 0.0
      %1528 = vmatpush1.msra.mxu0 0.0
      %1529 = vmatprep.subr.mxu0 0.0
      %1530 = vmatpush1.msra.mxu0 0.0
      %1531 = vmatprep.subr.mxu0 0.0
      %1532 = vmatpush1.msra.mxu0 0.0
      %1533 = vmatprep.subr.mxu0 0.0
      %1534 = vmatpush1.msra.mxu0 0.0
      %1535 = vmatprep.subr.mxu0 0.0
      %1536 = vmatpush1.msra.mxu0 0.0
      %1537 = vmatprep.subr.mxu0 0.0
      %1538 = vmatpush1.msra.mxu0 0.0
      %1539 = vmatprep.subr.mxu0 0.0
      %1540 = vmatpush1.msra.mxu0 0.0
      %1541 = vmatprep.subr.mxu0 0.0
      %1542 = vmatpush1.msra.mxu0 0.0
      %1543 = vmatprep.subr.mxu0 0.0
      %1544 = vmatpush1.msra.mxu0 0.0
      %1545 = vmatprep.subr.mxu0 0.0
      %1546 = vmatpush1.msra.mxu0 0.0
      %1547 = vmatprep.subr.mxu0 0.0
      %1548 = vmatpush1.msra.mxu0 0.0
      %1549 = vmatprep.subr.mxu0 0.0
      %1550 = vmatpush1.msra.mxu0 0.0
      %1551 = vmatprep.subr.mxu0 0.0
      %1552 = vmatpush1.msra.mxu0 0.0
      %1553 = vmatprep.subr.mxu0 0.0
      %1554 = vmatpush1.msra.mxu0 0.0
      %1555 = vmatprep.subr.mxu0 0.0
      %1556 = vmatpush1.msra.mxu0 0.0
      %1557 = vmatprep.subr.mxu0 0.0
      %1558 = vmatpush1.msra.mxu0 0.0
      %1559 = vmatprep.subr.mxu0 0.0
      %1560 = vmatpush1.msra.mxu0 0.0
      %1561 = vmatprep.mubr.f32.mxu0 0.0
      %1562 = vmatmul.mubr.f32.gmra.mrb[0].mxu0 %v1005
      %v1563 = vpop.f32.mrb[0].mxu0
      %v1564 = vadd.f32 0.0, %v1563
      %v1565 = vpop.f32.mrb[0].mxu0
      %1566 = vdwg.mxu0
      %v1567 = vadd.f32 %v995, %v1074
      %v1568 = vadd.f32 %v996, %v1144
      %v1569 = vadd.f32 %v997, %v1214
      %v1570 = vadd.f32 %v998, %v1284
      %v1571 = vadd.f32 %v999, %v1354
      %v1572 = vadd.f32 %v1000, %v1424
      %v1573 = vadd.f32 %v1001, %v1494
      %v1574 = vadd.f32 %v1002, %v1564
      %1575 = vst [vmem:[#allocation2] sm:$0xff] %v1567
      %1576 = vst [vmem:[#allocation2 + $0x8] sm:$0xff] %v1568
      %1577 = vst [vmem:[#allocation2 + $0x10] sm:$0xff] %v1569
      %1578 = vst [vmem:[#allocation2 + $0x18] sm:$0xff] %v1570
      %1579 = vst [vmem:[#allocation2 + $0x20] sm:$0xff] %v1571
      %1580 = vst [vmem:[#allocation2 + $0x28] sm:$0xff] %v1572
      %1581 = vst [vmem:[#allocation2 + $0x30] sm:$0xff] %v1573
      %1582 = vst [vmem:[#allocation2 + $0x38] sm:$0xff] %v1574
      %p1583 = scmp.eq.s32.totalorder %s22, 1
      // Predicated region
      $region41: #{lconv_forward.1} parent=35 // pred_check
        %p1584 = pneg %p1583
      $region42: #{lconv_forward.1} parent=35 // pred_check_branch
        %1586 = sbr.rel (%p1584) target = $region44
      $region43: #{lconv_forward.1} parent=35 // pred_region
        %v1587 = vld [vmem:[#allocation2] sm:$0xff]
        %v1588 = vld [vmem:[#allocation2 + $0x8] sm:$0xff]
        %v1589 = vld [vmem:[#allocation2 + $0x10] sm:$0xff]
        %v1590 = vld [vmem:[#allocation2 + $0x18] sm:$0xff]
        %v1591 = vld [vmem:[#allocation2 + $0x20] sm:$0xff]
        %v1592 = vld [vmem:[#allocation2 + $0x28] sm:$0xff]
        %v1593 = vld [vmem:[#allocation2 + $0x30] sm:$0xff]
        %v1594 = vld [vmem:[#allocation2 + $0x38] sm:$0xff]
        %1595 = vst [vmem:[%s274] sm:$0xff] %v1587
        %1596 = vst [vmem:[%s274 + $0x8] sm:$0xff] %v1588
        %1597 = vst [vmem:[%s274 + $0x10] sm:$0xff] %v1589
        %1598 = vst [vmem:[%s274 + $0x18] sm:$0xff] %v1590
        %1599 = vst [vmem:[%s274 + $0x20] sm:$0xff] %v1591
        %1600 = vst [vmem:[%s274 + $0x28] sm:$0xff] %v1592
        %1601 = vst [vmem:[%s274 + $0x30] sm:$0xff] %v1593
        %1602 = vst [vmem:[%s274 + $0x38] sm:$0xff] %v1594
      $region44: #{lconv_forward.1} parent=35 // pred_fallthru
        _
      %s1603 = smul.u32 8, %s20
      %p1604 = scmp.lt.s32.totalorder %s1603, 7
      %s1605 = scalar_select %p1604, %s1603, 7
      %p1606 = scmp.lt.s32.totalorder %s21, 0
      %s1607 = scalar_select %p1606, %s21, 0
      %s1608 = sadd.s32 %s1607, %s1605
      %s1609 = smul.addr %s1608, 8
      %s1610 = scalar_lea.vmem %s4, %s1609
      // Predicated region
      $region45: #{lconv_forward.1} parent=35 // pred_check
        %p1611 = pneg %p155
      $region46: #{lconv_forward.1} parent=35 // pred_check_branch
        %1613 = sbr.rel (%p1611) target = $region48
      $region47: #{lconv_forward.1} parent=35 // pred_region
        %s1614 = smul.u32 8, %s20
      $region48: #{lconv_forward.1} parent=35 // pred_fallthru
        _
      // Predicated region
      $region49: #{lconv_forward.1} parent=35 // pred_check
        %p1615 = pneg %p155
      $region50: #{lconv_forward.1} parent=35 // pred_check_branch
        %1617 = sbr.rel (%p1615) target = $region52
      $region51: #{lconv_forward.1} parent=35 // pred_region
        %s1618 = smul.u32 8, %s20
        %p1619 = scmp.lt.s32.totalorder %s1618, 7
        %s1620 = scalar_select %p1619, %s1618, 7
        %p1621 = scmp.lt.s32.totalorder %s21, 0
        %s1622 = scalar_select %p1621, %s21, 0
        %s1623 = sadd.s32 %s1622, %s1620
        %s1624 = smul.addr %s1623, 8
        %s1625 = scalar_lea.vmem %s4, %s1624
      $region52: #{lconv_forward.1} parent=35 // pred_fallthru
        _
    $region36: #{lconv_forward.1} parent=5 // pred_fallthru
      _
    %p1626 = scmp.le.s32.totalorder 2, %s10
    // Predicated region
    $region53: #{lconv_forward.1} parent=5 // pred_check
      %p1627 = pneg %p1626
    $region54: #{lconv_forward.1} parent=5 // pred_check_branch
      %1629 = sbr.rel (%p1627) target = $region56
    $region55: #{lconv_forward.1} parent=5 // pred_region
      %s1630 = ssub.s32 %s10, 2
    $region56: #{lconv_forward.1} parent=5 // pred_fallthru
      _
  $region6: #{lconv_forward.1} parent=0 // loop_footer
    %s14 = sadd.s32 1, %s10
  $region7: #{lconv_forward.1} parent=0 // loop_footer_branch
    %9 = sbr.rel target = $region3
  $region8: #{lconv_forward.1} parent=0 // loop_exit
    _

</llo_original>
